<compile_context>
chip_gen: v5e
topology: v5e:2x2
jax: 0.10.0
libtpu: 0.0.40
codegen_flags: <defaults>
</compile_context>

<pallas_src>
import math

import jax
import jax.numpy as jnp
from jax import lax
from jax.experimental import pallas as pl
from jax.experimental.pallas import tpu as pltpu

HP = dict(
    input_size=64,      # = num_channels * num_features
    output_size=20,
    hidden_size=32,
    num_layers=2,
    is_bidirectional=False,
    dropout_prob=0.1,   # identity at inference
    num_epochs=1,
)


# ---------------------------------------------------------------------------
# Pallas kernel: one time-block of the 2-layer unidirectional LSTM.
# h/c state persists in VMEM scratch across grid steps; the fused Linear head
# runs on the last grid step using the top layer's final hidden state.
# ---------------------------------------------------------------------------
def _lstm_head_kernel(x_ref,                  # [TT*B, I]   time-major, flattened
                      wih0_ref,               # [I, 4H]   gate cols [i,f,o,g]
                      whh0_ref,               # [H, 4H]
                      b0_ref,                 # [1, 4H]
                      w1_ref,                 # [2H, 4H]  = [[Wih1]; [Whh1]]
                      b1_ref,                 # [1, 4H]
                      wlin_ref,               # [H, O]
                      blin_ref,               # [1, O]
                      out_ref,                # [B, O]
                      gx_ref,                 # scratch [TT*B, 4H]
                      hh_ref,                 # scratch [B, 2H]  matmul staging
                      h0_ref, c0_ref, h1_ref, c1_ref):   # scratch [B, H] each
    B = out_ref.shape[0]
    H = whh0_ref.shape[0]
    TT = x_ref.shape[0] // B
    tb = pl.program_id(0)

    @pl.when(tb == 0)
    def _init():
        z = jnp.zeros((B, H), jnp.float32)
        h0_ref[...] = z
        c0_ref[...] = z
        h1_ref[...] = z
        c1_ref[...] = z

    # ---- hoisted layer-0 input projection for the whole time block ----------
    # One MXU-friendly, lane-dense matmul instead of TT tiny ones in the loop.
    gx_ref[...] = (jnp.dot(x_ref[...], wih0_ref[...],
                           preferred_element_type=jnp.float32)
                   + b0_ref[...])

    # ---- hoist loop-invariant operands out of the recurrence ----------------
    whh0 = whh0_ref[...]
    w1 = w1_ref[...]
    b1 = jnp.broadcast_to(b1_ref[...], (B, 4 * H))

    def activate(gates, c):
        # gate column order is [i, f, o, g]: one contiguous sigmoid + one tanh
        sig = jax.nn.sigmoid(gates[:, :3 * H])     # [B, 3H]  -> i, f, o
        g = jnp.tanh(gates[:, 3 * H:])             # [B, H]
        i = sig[:, 0 * H:1 * H]
        f = sig[:, 1 * H:2 * H]
        o = sig[:, 2 * H:3 * H]
        c_new = f * c + i * g
        h_new = o * jnp.tanh(c_new)
        return h_new, c_new

    def step(t, carry):
        h0, c0, h1, c1 = carry
        # layer 0: only the recurrent matmul remains on the serial path
        row = pl.multiple_of(t * B, B)
        g0 = gx_ref[pl.ds(row, B), :] + jnp.dot(
            h0, whh0, preferred_element_type=jnp.float32)
        h0, c0 = activate(g0, c0)
        # layer 1: single fused MXU push  [h0 | h1] @ [[Wih1]; [Whh1]]
        hh_ref[:, :H] = h0
        hh_ref[:, H:] = h1
        g1 = jnp.dot(hh_ref[...], w1, preferred_element_type=jnp.float32) + b1
        h1, c1 = activate(g1, c1)
        return (h0, c0, h1, c1)

    carry0 = (h0_ref[...], c0_ref[...], h1_ref[...], c1_ref[...])
    # Small fixed time tile -> fully unroll for LLO scheduling visibility.
    h0, c0, h1, c1 = lax.fori_loop(0, TT, step, carry0, unroll=True)

    h0_ref[...] = h0
    c0_ref[...] = c0
    h1_ref[...] = h1
    c1_ref[...] = c1

    @pl.when(tb == pl.num_programs(0) - 1)
    def _finalize():
        # output[:, -1, :] -> dropout (identity in eval) -> linear
        out_ref[...] = (jnp.dot(h1, wlin_ref[...],
                                preferred_element_type=jnp.float32)
                        + blin_ref[...])


# ---------------------------------------------------------------------------
# Wrapper (layout + parameter plumbing)
# ---------------------------------------------------------------------------
def _pick_time_tile(T, cap=32):
    for tt in range(min(T, cap), 0, -1):
        if T % tt == 0:
            return tt
    return 1


def rs_vocoder_forward(x_bctf, kp, *, time_tile=None):
    B, C, T, F = x_bctf.shape
    I = C * F
    assert I == HP['input_size']
    H = HP['hidden_size']
    O = HP['output_size']

    if time_tile is None:
        time_tile = _pick_time_tile(T)
    assert T % time_tile == 0

    # Single layout change: [B,C,T,F] -> [T,B,C,F] -> [T*B, C*F] (time-major).
    # (equivalent to the module's permute(0,2,1,3).reshape + time-major view)
    x = jnp.transpose(x_bctf, (2, 0, 1, 3)).reshape(T * B, I).astype(jnp.float32)

    c2 = lambda t: (0, 0)   # constant (resident) blocks for weights / output
    return pl.pallas_call(
        _lstm_head_kernel,
        out_shape=jax.ShapeDtypeStruct((B, O), jnp.float32),
        grid=(T // time_tile,),
        in_specs=[
            pl.BlockSpec((time_tile * B, I), lambda t: (t, 0)),   # x time block
            pl.BlockSpec((I, 4 * H), c2),
            pl.BlockSpec((H, 4 * H), c2),
            pl.BlockSpec((1, 4 * H), c2),
            pl.BlockSpec((2 * H, 4 * H), c2),
            pl.BlockSpec((1, 4 * H), c2),
            pl.BlockSpec((H, O), c2),
            pl.BlockSpec((1, O), c2),
        ],
        out_specs=pl.BlockSpec((B, O), c2),
        scratch_shapes=[
            pltpu.VMEM((time_tile * B, 4 * H), jnp.float32),  # precomputed gates
            pltpu.VMEM((B, 2 * H), jnp.float32),              # [h0|h1] staging
            pltpu.VMEM((B, H), jnp.float32),                  # h0
            pltpu.VMEM((B, H), jnp.float32),                  # c0
            pltpu.VMEM((B, H), jnp.float32),                  # h1
            pltpu.VMEM((B, H), jnp.float32),                  # c1
        ],
        compiler_params=pltpu.CompilerParams(
            dimension_semantics=("arbitrary",),        # sequential recurrence
            vmem_limit_bytes=32 * 1024 * 1024,         # safe on v5e/v6e/v7x
        ),
    )(x, kp['wih0_T'], kp['whh0_T'], kp['b0'],
      kp['w1cat'], kp['b1'], kp['wlin_T'], kp['blin'])


# ---------------------------------------------------------------------------
# Deterministic parameter init (PyTorch layout / bounds) + kernel-layout prep
# ---------------------------------------------------------------------------
def init_raw_params(key):
    I, H, O = HP['input_size'], HP['hidden_size'], HP['output_size']
    bound = 1.0 / math.sqrt(H)
    keys = jax.random.split(key, 10)

    def u(k, shape):
        return jax.random.uniform(k, shape, jnp.float32, -bound, bound)

    return dict(
        wih0=u(keys[0], (4 * H, I)), whh0=u(keys[1], (4 * H, H)),
        bih0=u(keys[2], (4 * H,)), bhh0=u(keys[3], (4 * H,)),
        wih1=u(keys[4], (4 * H, H)), whh1=u(keys[5], (4 * H, H)),
        bih1=u(keys[6], (4 * H,)), bhh1=u(keys[7], (4 * H,)),
        wlin=u(keys[8], (O, H)), blin=u(keys[9], (O,)),
    )


def prep_kernel_params(raw):
    H = HP['hidden_size']
    # PyTorch gate order is [i, f, g, o]; reorder to [i, f, o, g] so the kernel
    # does one contiguous sigmoid (0:3H) and one tanh (3H:4H).
    perm = jnp.concatenate([jnp.arange(0, 2 * H),
                            jnp.arange(3 * H, 4 * H),
                            jnp.arange(2 * H, 3 * H)])
    ro = lambda w: w[perm]
    return dict(
        wih0_T=ro(raw['wih0']).T,                                   # [I, 4H]
        whh0_T=ro(raw['whh0']).T,                                   # [H, 4H]
        b0=ro(raw['bih0'] + raw['bhh0'])[None, :],                  # [1, 4H]
        w1cat=jnp.concatenate([ro(raw['wih1']).T, ro(raw['whh1']).T], axis=0),
        b1=ro(raw['bih1'] + raw['bhh1'])[None, :],                  # [1, 4H]
        wlin_T=raw['wlin'].T,                                       # [H, O]
        blin=raw['blin'][None, :],                                  # [1, O]
    )


# ---------------------------------------------------------------------------
# Pure-JAX reference (PyTorch gate order, unpermuted weights) for correctness
# ---------------------------------------------------------------------------
def reference_forward(x_bctf, raw):
    B, C, T, F = x_bctf.shape
    H = HP['hidden_size']
    x = jnp.transpose(x_bctf, (0, 2, 1, 3)).reshape(B, T, C * F).astype(jnp.float32)

    def cell(x_t, h, c, wih, whh, bih, bhh):
        g = x_t @ wih.T + h @ whh.T + bih + bhh
        i = jax.nn.sigmoid(g[:, 0 * H:1 * H])
        f = jax.nn.sigmoid(g[:, 1 * H:2 * H])
        gg = jnp.tanh(g[:, 2 * H:3 * H])
        o = jax.nn.sigmoid(g[:, 3 * H:4 * H])
        c = f * c + i * gg
        h = o * jnp.tanh(c)
        return h, c

    h0 = c0 = h1 = c1 = jnp.zeros((B, H), jnp.float32)
    for t in range(T):
        h0, c0 = cell(x[:, t, :], h0, c0,
                      raw['wih0'], raw['whh0'], raw['bih0'], raw['bhh0'])
        h1, c1 = cell(h0, h1, c1,
                      raw['wih1'], raw['whh1'], raw['bih1'], raw['bhh1'])
    return h1 @ raw['wlin'].T + raw['blin'][None, :]


if __name__ == "__main__":
    key = jax.random.PRNGKey(0)
    k_x, k_p = jax.random.split(key)

    B, C, T, F = 2, 4, 8, 16                      # input_size = C*F = 64
    X_batch = jax.random.normal(k_x, (B, C, T, F), jnp.float32)
    raw = init_raw_params(k_p)
    kp = prep_kernel_params(raw)

    out = jax.block_until_ready(rs_vocoder_forward(X_batch, kp))
    assert out.shape == (B, HP['output_size'])

    ref = reference_forward(X_batch, raw)
    assert jnp.allclose(out, ref, atol=1e-4, rtol=1e-4), "mismatch vs JAX reference"

    print("KERNEL_OK")
</pallas_src>

<mosaic_0001>
module attributes {stable_mosaic.version = 11 : i64} {
  func.func @_lstm_head_kernel(%arg0: i32, %arg1: memref<16x64xf32, #tpu.memory_space<vmem>>, %arg2: memref<64x128xf32, #tpu.memory_space<vmem>>, %arg3: memref<32x128xf32, #tpu.memory_space<vmem>>, %arg4: memref<1x128xf32, #tpu.memory_space<vmem>>, %arg5: memref<64x128xf32, #tpu.memory_space<vmem>>, %arg6: memref<1x128xf32, #tpu.memory_space<vmem>>, %arg7: memref<32x20xf32, #tpu.memory_space<vmem>>, %arg8: memref<1x20xf32, #tpu.memory_space<vmem>>, %arg9: memref<2x20xf32, #tpu.memory_space<vmem>>, %arg10: memref<16x128xf32, #tpu.memory_space<vmem>>, %arg11: memref<2x64xf32, #tpu.memory_space<vmem>>, %arg12: memref<2x32xf32, #tpu.memory_space<vmem>>, %arg13: memref<2x32xf32, #tpu.memory_space<vmem>>, %arg14: memref<2x32xf32, #tpu.memory_space<vmem>>, %arg15: memref<2x32xf32, #tpu.memory_space<vmem>>) attributes {dimension_semantics = [#tpu.dimension_semantics<arbitrary>], iteration_bounds = array<i64: 1>, scalar_prefetch = 0 : i64, scratch_operands = 6 : i64, tpu.core_type = #tpu.core_type<tc>, window_params = [{transform_indices = @transform_0, window_bounds = array<i64: 16, 64>}, {pipeline_mode = #tpu.pipeline_mode<synchronous>, transform_indices = @transform_1, window_bounds = array<i64: 64, 128>}, {pipeline_mode = #tpu.pipeline_mode<synchronous>, transform_indices = @transform_2, window_bounds = array<i64: 32, 128>}, {pipeline_mode = #tpu.pipeline_mode<synchronous>, transform_indices = @transform_3, window_bounds = array<i64: 1, 128>}, {pipeline_mode = #tpu.pipeline_mode<synchronous>, transform_indices = @transform_4, window_bounds = array<i64: 64, 128>}, {pipeline_mode = #tpu.pipeline_mode<synchronous>, transform_indices = @transform_5, window_bounds = array<i64: 1, 128>}, {pipeline_mode = #tpu.pipeline_mode<synchronous>, transform_indices = @transform_6, window_bounds = array<i64: 32, 20>}, {pipeline_mode = #tpu.pipeline_mode<synchronous>, transform_indices = @transform_7, window_bounds = array<i64: 1, 20>}, {pipeline_mode = #tpu.pipeline_mode<synchronous>, transform_indices = @transform_8, window_bounds = array<i64: 2, 20>}]} {
    %c0_i32 = arith.constant 0 : i32
    %0 = arith.cmpi eq, %arg0, %c0_i32 : i32
    %1 = arith.extui %0 : i1 to i32
    %c0_i32_0 = arith.constant 0 : i32
    %2 = arith.cmpi ne, %1, %c0_i32_0 : i32
    scf.if %2 {
      %cst_128 = arith.constant 0.000000e+00 : f32
      %370 = vector.broadcast %cst_128 : f32 to vector<2x32xf32>
      %c0_129 = arith.constant 0 : index
      %c0_130 = arith.constant 0 : index
      %371 = vector.load %arg12[%c0_129, %c0_130] : memref<2x32xf32, #tpu.memory_space<vmem>>, vector<2x32xf32>
      tpu.vector_store %arg12[%c0_129, %c0_130], %370 {strides = array<i32>} : memref<2x32xf32, #tpu.memory_space<vmem>>, vector<2x32xf32>,
      %c0_131 = arith.constant 0 : index
      %c0_132 = arith.constant 0 : index
      %372 = vector.load %arg13[%c0_131, %c0_132] : memref<2x32xf32, #tpu.memory_space<vmem>>, vector<2x32xf32>
      tpu.vector_store %arg13[%c0_131, %c0_132], %370 {strides = array<i32>} : memref<2x32xf32, #tpu.memory_space<vmem>>, vector<2x32xf32>,
      %c0_133 = arith.constant 0 : index
      %c0_134 = arith.constant 0 : index
      %373 = vector.load %arg14[%c0_133, %c0_134] : memref<2x32xf32, #tpu.memory_space<vmem>>, vector<2x32xf32>
      tpu.vector_store %arg14[%c0_133, %c0_134], %370 {strides = array<i32>} : memref<2x32xf32, #tpu.memory_space<vmem>>, vector<2x32xf32>,
      %c0_135 = arith.constant 0 : index
      %c0_136 = arith.constant 0 : index
      %374 = vector.load %arg15[%c0_135, %c0_136] : memref<2x32xf32, #tpu.memory_space<vmem>>, vector<2x32xf32>
      tpu.vector_store %arg15[%c0_135, %c0_136], %370 {strides = array<i32>} : memref<2x32xf32, #tpu.memory_space<vmem>>, vector<2x32xf32>,
    } else {
    }
    %c0 = arith.constant 0 : index
    %c0_1 = arith.constant 0 : index
    %3 = vector.load %arg1[%c0, %c0_1] : memref<16x64xf32, #tpu.memory_space<vmem>>, vector<16x64xf32>
    %c0_2 = arith.constant 0 : index
    %c0_3 = arith.constant 0 : index
    %4 = vector.load %arg2[%c0_2, %c0_3] : memref<64x128xf32, #tpu.memory_space<vmem>>, vector<64x128xf32>
    %cst = arith.constant dense<0.000000e+00> : vector<16x128xf32>
    %5 = tpu.matmul %3, %4, %cst {dimension_numbers = #tpu.dot_dimension_numbers<[1], [0], [0], [1], [0, 0, 1, 1], [], []>} : vector<16x64xf32>, vector<64x128xf32>, vector<16x128xf32> -> vector<16x128xf32>
    %c0_4 = arith.constant 0 : index
    %c0_5 = arith.constant 0 : index
    %6 = vector.load %arg4[%c0_4, %c0_5] : memref<1x128xf32, #tpu.memory_space<vmem>>, vector<1x128xf32>
    %7 = vector.broadcast %6 : vector<1x128xf32> to vector<16x128xf32>
    %8 = arith.addf %5, %7 : vector<16x128xf32>
    %c0_6 = arith.constant 0 : index
    %c0_7 = arith.constant 0 : index
    %9 = vector.load %arg10[%c0_6, %c0_7] : memref<16x128xf32, #tpu.memory_space<vmem>>, vector<16x128xf32>
    tpu.vector_store %arg10[%c0_6, %c0_7], %8 {strides = array<i32>} : memref<16x128xf32, #tpu.memory_space<vmem>>, vector<16x128xf32>,
    %c0_8 = arith.constant 0 : index
    %c0_9 = arith.constant 0 : index
    %10 = vector.load %arg3[%c0_8, %c0_9] : memref<32x128xf32, #tpu.memory_space<vmem>>, vector<32x128xf32>
    %c0_10 = arith.constant 0 : index
    %c0_11 = arith.constant 0 : index
    %11 = vector.load %arg5[%c0_10, %c0_11] : memref<64x128xf32, #tpu.memory_space<vmem>>, vector<64x128xf32>
    %c0_12 = arith.constant 0 : index
    %c0_13 = arith.constant 0 : index
    %12 = vector.load %arg6[%c0_12, %c0_13] : memref<1x128xf32, #tpu.memory_space<vmem>>, vector<1x128xf32>
    %13 = vector.shape_cast %12 : vector<1x128xf32> to vector<1x128xf32>
    %14 = vector.broadcast %13 : vector<1x128xf32> to vector<2x128xf32>
    %c0_14 = arith.constant 0 : index
    %c0_15 = arith.constant 0 : index
    %15 = vector.load %arg12[%c0_14, %c0_15] : memref<2x32xf32, #tpu.memory_space<vmem>>, vector<2x32xf32>
    %c0_16 = arith.constant 0 : index
    %c0_17 = arith.constant 0 : index
    %16 = vector.load %arg13[%c0_16, %c0_17] : memref<2x32xf32, #tpu.memory_space<vmem>>, vector<2x32xf32>
    %c0_18 = arith.constant 0 : index
    %c0_19 = arith.constant 0 : index
    %17 = vector.load %arg14[%c0_18, %c0_19] : memref<2x32xf32, #tpu.memory_space<vmem>>, vector<2x32xf32>
    %c0_20 = arith.constant 0 : index
    %c0_21 = arith.constant 0 : index
    %18 = vector.load %arg15[%c0_20, %c0_21] : memref<2x32xf32, #tpu.memory_space<vmem>>, vector<2x32xf32>
    %c0_i32_22 = arith.constant 0 : i32
    %c2_i32 = arith.constant 2 : i32
    %19 = arith.muli %c0_i32_22, %c2_i32 : i32
    %20 = tpu.assume_multiple %19, 2 : i32
    %21 = arith.index_cast %20 : i32 to index
    %c0_23 = arith.constant 0 : index
    %22 = vector.load %arg10[%21, %c0_23] : memref<16x128xf32, #tpu.memory_space<vmem>>, vector<2x128xf32>
    %cst_24 = arith.constant dense<0.000000e+00> : vector<2x128xf32>
    %23 = tpu.matmul %15, %10, %cst_24 {dimension_numbers = #tpu.dot_dimension_numbers<[1], [0], [0], [1], [0, 0, 1, 1], [], []>} : vector<2x32xf32>, vector<32x128xf32>, vector<2x128xf32> -> vector<2x128xf32>
    %24 = arith.addf %22, %23 : vector<2x128xf32>
    %25 = vector.extract_strided_slice %24 {offsets = [0, 0], sizes = [2, 96], strides = [1, 1]} : vector<2x128xf32> to vector<2x96xf32>
    %26 = arith.negf %25 : vector<2x96xf32>
    %27 = math.exp %26 : vector<2x96xf32>
    %cst_25 = arith.constant 1.000000e+00 : f32
    %28 = vector.broadcast %cst_25 : f32 to vector<2x96xf32>
    %29 = arith.addf %28, %27 : vector<2x96xf32>
    %30 = arith.divf %28, %29 : vector<2x96xf32>
    %31 = vector.extract_strided_slice %24 {offsets = [0, 96], sizes = [2, 32], strides = [1, 1]} : vector<2x128xf32> to vector<2x32xf32>
    %32 = math.tanh %31 : vector<2x32xf32>
    %33 = vector.extract_strided_slice %30 {offsets = [0, 0], sizes = [2, 32], strides = [1, 1]} : vector<2x96xf32> to vector<2x32xf32>
    %34 = vector.extract_strided_slice %30 {offsets = [0, 32], sizes = [2, 32], strides = [1, 1]} : vector<2x96xf32> to vector<2x32xf32>
    %35 = vector.extract_strided_slice %30 {offsets = [0, 64], sizes = [2, 32], strides = [1, 1]} : vector<2x96xf32> to vector<2x32xf32>
    %36 = arith.mulf %34, %16 : vector<2x32xf32>
    %37 = arith.mulf %33, %32 : vector<2x32xf32>
    %38 = arith.addf %36, %37 : vector<2x32xf32>
    %39 = math.tanh %38 : vector<2x32xf32>
    %40 = arith.mulf %35, %39 : vector<2x32xf32>
    %c0_26 = arith.constant 0 : index
    %c0_27 = arith.constant 0 : index
    %41 = vector.load %arg11[%c0_26, %c0_27] : memref<2x64xf32, #tpu.memory_space<vmem>>, vector<2x32xf32>
    tpu.vector_store %arg11[%c0_26, %c0_27], %40 {strides = array<i32>} : memref<2x64xf32, #tpu.memory_space<vmem>>, vector<2x32xf32>,
    %c0_28 = arith.constant 0 : index
    %c32 = arith.constant 32 : index
    %42 = vector.load %arg11[%c0_28, %c32] : memref<2x64xf32, #tpu.memory_space<vmem>>, vector<2x32xf32>
    tpu.vector_store %arg11[%c0_28, %c32], %17 {strides = array<i32>} : memref<2x64xf32, #tpu.memory_space<vmem>>, vector<2x32xf32>,
    %c0_29 = arith.constant 0 : index
    %c0_30 = arith.constant 0 : index
    %43 = vector.load %arg11[%c0_29, %c0_30] : memref<2x64xf32, #tpu.memory_space<vmem>>, vector<2x64xf32>
    %cst_31 = arith.constant dense<0.000000e+00> : vector<2x128xf32>
    %44 = tpu.matmul %43, %11, %cst_31 {dimension_numbers = #tpu.dot_dimension_numbers<[1], [0], [0], [1], [0, 0, 1, 1], [], []>} : vector<2x64xf32>, vector<64x128xf32>, vector<2x128xf32> -> vector<2x128xf32>
    %45 = arith.addf %44, %14 : vector<2x128xf32>
    %46 = vector.extract_strided_slice %45 {offsets = [0, 0], sizes = [2, 96], strides = [1, 1]} : vector<2x128xf32> to vector<2x96xf32>
    %47 = arith.negf %46 : vector<2x96xf32>
    %48 = math.exp %47 : vector<2x96xf32>
    %cst_32 = arith.constant 1.000000e+00 : f32
    %49 = vector.broadcast %cst_32 : f32 to vector<2x96xf32>
    %50 = arith.addf %49, %48 : vector<2x96xf32>
    %51 = arith.divf %49, %50 : vector<2x96xf32>
    %52 = vector.extract_strided_slice %45 {offsets = [0, 96], sizes = [2, 32], strides = [1, 1]} : vector<2x128xf32> to vector<2x32xf32>
    %53 = math.tanh %52 : vector<2x32xf32>
    %54 = vector.extract_strided_slice %51 {offsets = [0, 0], sizes = [2, 32], strides = [1, 1]} : vector<2x96xf32> to vector<2x32xf32>
    %55 = vector.extract_strided_slice %51 {offsets = [0, 32], sizes = [2, 32], strides = [1, 1]} : vector<2x96xf32> to vector<2x32xf32>
    %56 = vector.extract_strided_slice %51 {offsets = [0, 64], sizes = [2, 32], strides = [1, 1]} : vector<2x96xf32> to vector<2x32xf32>
    %57 = arith.mulf %55, %18 : vector<2x32xf32>
    %58 = arith.mulf %54, %53 : vector<2x32xf32>
    %59 = arith.addf %57, %58 : vector<2x32xf32>
    %60 = math.tanh %59 : vector<2x32xf32>
    %61 = arith.mulf %56, %60 : vector<2x32xf32>
    %c1_i32 = arith.constant 1 : i32
    %c2_i32_33 = arith.constant 2 : i32
    %62 = arith.muli %c1_i32, %c2_i32_33 : i32
    %63 = tpu.assume_multiple %62, 2 : i32
    %64 = arith.index_cast %63 : i32 to index
    %c0_34 = arith.constant 0 : index
    %65 = vector.load %arg10[%64, %c0_34] : memref<16x128xf32, #tpu.memory_space<vmem>>, vector<2x128xf32>
    %cst_35 = arith.constant dense<0.000000e+00> : vector<2x128xf32>
    %66 = tpu.matmul %40, %10, %cst_35 {dimension_numbers = #tpu.dot_dimension_numbers<[1], [0], [0], [1], [0, 0, 1, 1], [], []>} : vector<2x32xf32>, vector<32x128xf32>, vector<2x128xf32> -> vector<2x128xf32>
    %67 = arith.addf %65, %66 : vector<2x128xf32>
    %68 = vector.extract_strided_slice %67 {offsets = [0, 0], sizes = [2, 96], strides = [1, 1]} : vector<2x128xf32> to vector<2x96xf32>
    %69 = arith.negf %68 : vector<2x96xf32>
    %70 = math.exp %69 : vector<2x96xf32>
    %cst_36 = arith.constant 1.000000e+00 : f32
    %71 = vector.broadcast %cst_36 : f32 to vector<2x96xf32>
    %72 = arith.addf %71, %70 : vector<2x96xf32>
    %73 = arith.divf %71, %72 : vector<2x96xf32>
    %74 = vector.extract_strided_slice %67 {offsets = [0, 96], sizes = [2, 32], strides = [1, 1]} : vector<2x128xf32> to vector<2x32xf32>
    %75 = math.tanh %74 : vector<2x32xf32>
    %76 = vector.extract_strided_slice %73 {offsets = [0, 0], sizes = [2, 32], strides = [1, 1]} : vector<2x96xf32> to vector<2x32xf32>
    %77 = vector.extract_strided_slice %73 {offsets = [0, 32], sizes = [2, 32], strides = [1, 1]} : vector<2x96xf32> to vector<2x32xf32>
    %78 = vector.extract_strided_slice %73 {offsets = [0, 64], sizes = [2, 32], strides = [1, 1]} : vector<2x96xf32> to vector<2x32xf32>
    %79 = arith.mulf %77, %38 : vector<2x32xf32>
    %80 = arith.mulf %76, %75 : vector<2x32xf32>
    %81 = arith.addf %79, %80 : vector<2x32xf32>
    %82 = math.tanh %81 : vector<2x32xf32>
    %83 = arith.mulf %78, %82 : vector<2x32xf32>
    %c0_37 = arith.constant 0 : index
    %c0_38 = arith.constant 0 : index
    %84 = vector.load %arg11[%c0_37, %c0_38] : memref<2x64xf32, #tpu.memory_space<vmem>>, vector<2x32xf32>
    tpu.vector_store %arg11[%c0_37, %c0_38], %83 {strides = array<i32>} : memref<2x64xf32, #tpu.memory_space<vmem>>, vector<2x32xf32>,
    %c0_39 = arith.constant 0 : index
    %c32_40 = arith.constant 32 : index
    %85 = vector.load %arg11[%c0_39, %c32_40] : memref<2x64xf32, #tpu.memory_space<vmem>>, vector<2x32xf32>
    tpu.vector_store %arg11[%c0_39, %c32_40], %61 {strides = array<i32>} : memref<2x64xf32, #tpu.memory_space<vmem>>, vector<2x32xf32>,
    %c0_41 = arith.constant 0 : index
    %c0_42 = arith.constant 0 : index
    %86 = vector.load %arg11[%c0_41, %c0_42] : memref<2x64xf32, #tpu.memory_space<vmem>>, vector<2x64xf32>
    %cst_43 = arith.constant dense<0.000000e+00> : vector<2x128xf32>
    %87 = tpu.matmul %86, %11, %cst_43 {dimension_numbers = #tpu.dot_dimension_numbers<[1], [0], [0], [1], [0, 0, 1, 1], [], []>} : vector<2x64xf32>, vector<64x128xf32>, vector<2x128xf32> -> vector<2x128xf32>
    %88 = arith.addf %87, %14 : vector<2x128xf32>
    %89 = vector.extract_strided_slice %88 {offsets = [0, 0], sizes = [2, 96], strides = [1, 1]} : vector<2x128xf32> to vector<2x96xf32>
    %90 = arith.negf %89 : vector<2x96xf32>
    %91 = math.exp %90 : vector<2x96xf32>
    %cst_44 = arith.constant 1.000000e+00 : f32
    %92 = vector.broadcast %cst_44 : f32 to vector<2x96xf32>
    %93 = arith.addf %92, %91 : vector<2x96xf32>
    %94 = arith.divf %92, %93 : vector<2x96xf32>
    %95 = vector.extract_strided_slice %88 {offsets = [0, 96], sizes = [2, 32], strides = [1, 1]} : vector<2x128xf32> to vector<2x32xf32>
    %96 = math.tanh %95 : vector<2x32xf32>
    %97 = vector.extract_strided_slice %94 {offsets = [0, 0], sizes = [2, 32], strides = [1, 1]} : vector<2x96xf32> to vector<2x32xf32>
    %98 = vector.extract_strided_slice %94 {offsets = [0, 32], sizes = [2, 32], strides = [1, 1]} : vector<2x96xf32> to vector<2x32xf32>
    %99 = vector.extract_strided_slice %94 {offsets = [0, 64], sizes = [2, 32], strides = [1, 1]} : vector<2x96xf32> to vector<2x32xf32>
    %100 = arith.mulf %98, %59 : vector<2x32xf32>
    %101 = arith.mulf %97, %96 : vector<2x32xf32>
    %102 = arith.addf %100, %101 : vector<2x32xf32>
    %103 = math.tanh %102 : vector<2x32xf32>
    %104 = arith.mulf %99, %103 : vector<2x32xf32>
    %c2_i32_45 = arith.constant 2 : i32
    %c2_i32_46 = arith.constant 2 : i32
    %105 = arith.muli %c2_i32_45, %c2_i32_46 : i32
    %106 = tpu.assume_multiple %105, 2 : i32
    %107 = arith.index_cast %106 : i32 to index
    %c0_47 = arith.constant 0 : index
    %108 = vector.load %arg10[%107, %c0_47] : memref<16x128xf32, #tpu.memory_space<vmem>>, vector<2x128xf32>
    %cst_48 = arith.constant dense<0.000000e+00> : vector<2x128xf32>
    %109 = tpu.matmul %83, %10, %cst_48 {dimension_numbers = #tpu.dot_dimension_numbers<[1], [0], [0], [1], [0, 0, 1, 1], [], []>} : vector<2x32xf32>, vector<32x128xf32>, vector<2x128xf32> -> vector<2x128xf32>
    %110 = arith.addf %108, %109 : vector<2x128xf32>
    %111 = vector.extract_strided_slice %110 {offsets = [0, 0], sizes = [2, 96], strides = [1, 1]} : vector<2x128xf32> to vector<2x96xf32>
    %112 = arith.negf %111 : vector<2x96xf32>
    %113 = math.exp %112 : vector<2x96xf32>
    %cst_49 = arith.constant 1.000000e+00 : f32
    %114 = vector.broadcast %cst_49 : f32 to vector<2x96xf32>
    %115 = arith.addf %114, %113 : vector<2x96xf32>
    %116 = arith.divf %114, %115 : vector<2x96xf32>
    %117 = vector.extract_strided_slice %110 {offsets = [0, 96], sizes = [2, 32], strides = [1, 1]} : vector<2x128xf32> to vector<2x32xf32>
    %118 = math.tanh %117 : vector<2x32xf32>
    %119 = vector.extract_strided_slice %116 {offsets = [0, 0], sizes = [2, 32], strides = [1, 1]} : vector<2x96xf32> to vector<2x32xf32>
    %120 = vector.extract_strided_slice %116 {offsets = [0, 32], sizes = [2, 32], strides = [1, 1]} : vector<2x96xf32> to vector<2x32xf32>
    %121 = vector.extract_strided_slice %116 {offsets = [0, 64], sizes = [2, 32], strides = [1, 1]} : vector<2x96xf32> to vector<2x32xf32>
    %122 = arith.mulf %120, %81 : vector<2x32xf32>
    %123 = arith.mulf %119, %118 : vector<2x32xf32>
    %124 = arith.addf %122, %123 : vector<2x32xf32>
    %125 = math.tanh %124 : vector<2x32xf32>
    %126 = arith.mulf %121, %125 : vector<2x32xf32>
    %c0_50 = arith.constant 0 : index
    %c0_51 = arith.constant 0 : index
    %127 = vector.load %arg11[%c0_50, %c0_51] : memref<2x64xf32, #tpu.memory_space<vmem>>, vector<2x32xf32>
    tpu.vector_store %arg11[%c0_50, %c0_51], %126 {strides = array<i32>} : memref<2x64xf32, #tpu.memory_space<vmem>>, vector<2x32xf32>,
    %c0_52 = arith.constant 0 : index
    %c32_53 = arith.constant 32 : index
    %128 = vector.load %arg11[%c0_52, %c32_53] : memref<2x64xf32, #tpu.memory_space<vmem>>, vector<2x32xf32>
    tpu.vector_store %arg11[%c0_52, %c32_53], %104 {strides = array<i32>} : memref<2x64xf32, #tpu.memory_space<vmem>>, vector<2x32xf32>,
    %c0_54 = arith.constant 0 : index
    %c0_55 = arith.constant 0 : index
    %129 = vector.load %arg11[%c0_54, %c0_55] : memref<2x64xf32, #tpu.memory_space<vmem>>, vector<2x64xf32>
    %cst_56 = arith.constant dense<0.000000e+00> : vector<2x128xf32>
    %130 = tpu.matmul %129, %11, %cst_56 {dimension_numbers = #tpu.dot_dimension_numbers<[1], [0], [0], [1], [0, 0, 1, 1], [], []>} : vector<2x64xf32>, vector<64x128xf32>, vector<2x128xf32> -> vector<2x128xf32>
    %131 = arith.addf %130, %14 : vector<2x128xf32>
    %132 = vector.extract_strided_slice %131 {offsets = [0, 0], sizes = [2, 96], strides = [1, 1]} : vector<2x128xf32> to vector<2x96xf32>
    %133 = arith.negf %132 : vector<2x96xf32>
    %134 = math.exp %133 : vector<2x96xf32>
    %cst_57 = arith.constant 1.000000e+00 : f32
    %135 = vector.broadcast %cst_57 : f32 to vector<2x96xf32>
    %136 = arith.addf %135, %134 : vector<2x96xf32>
    %137 = arith.divf %135, %136 : vector<2x96xf32>
    %138 = vector.extract_strided_slice %131 {offsets = [0, 96], sizes = [2, 32], strides = [1, 1]} : vector<2x128xf32> to vector<2x32xf32>
    %139 = math.tanh %138 : vector<2x32xf32>
    %140 = vector.extract_strided_slice %137 {offsets = [0, 0], sizes = [2, 32], strides = [1, 1]} : vector<2x96xf32> to vector<2x32xf32>
    %141 = vector.extract_strided_slice %137 {offsets = [0, 32], sizes = [2, 32], strides = [1, 1]} : vector<2x96xf32> to vector<2x32xf32>
    %142 = vector.extract_strided_slice %137 {offsets = [0, 64], sizes = [2, 32], strides = [1, 1]} : vector<2x96xf32> to vector<2x32xf32>
    %143 = arith.mulf %141, %102 : vector<2x32xf32>
    %144 = arith.mulf %140, %139 : vector<2x32xf32>
    %145 = arith.addf %143, %144 : vector<2x32xf32>
    %146 = math.tanh %145 : vector<2x32xf32>
    %147 = arith.mulf %142, %146 : vector<2x32xf32>
    %c3_i32 = arith.constant 3 : i32
    %c2_i32_58 = arith.constant 2 : i32
    %148 = arith.muli %c3_i32, %c2_i32_58 : i32
    %149 = tpu.assume_multiple %148, 2 : i32
    %150 = arith.index_cast %149 : i32 to index
    %c0_59 = arith.constant 0 : index
    %151 = vector.load %arg10[%150, %c0_59] : memref<16x128xf32, #tpu.memory_space<vmem>>, vector<2x128xf32>
    %cst_60 = arith.constant dense<0.000000e+00> : vector<2x128xf32>
    %152 = tpu.matmul %126, %10, %cst_60 {dimension_numbers = #tpu.dot_dimension_numbers<[1], [0], [0], [1], [0, 0, 1, 1], [], []>} : vector<2x32xf32>, vector<32x128xf32>, vector<2x128xf32> -> vector<2x128xf32>
    %153 = arith.addf %151, %152 : vector<2x128xf32>
    %154 = vector.extract_strided_slice %153 {offsets = [0, 0], sizes = [2, 96], strides = [1, 1]} : vector<2x128xf32> to vector<2x96xf32>
    %155 = arith.negf %154 : vector<2x96xf32>
    %156 = math.exp %155 : vector<2x96xf32>
    %cst_61 = arith.constant 1.000000e+00 : f32
    %157 = vector.broadcast %cst_61 : f32 to vector<2x96xf32>
    %158 = arith.addf %157, %156 : vector<2x96xf32>
    %159 = arith.divf %157, %158 : vector<2x96xf32>
    %160 = vector.extract_strided_slice %153 {offsets = [0, 96], sizes = [2, 32], strides = [1, 1]} : vector<2x128xf32> to vector<2x32xf32>
    %161 = math.tanh %160 : vector<2x32xf32>
    %162 = vector.extract_strided_slice %159 {offsets = [0, 0], sizes = [2, 32], strides = [1, 1]} : vector<2x96xf32> to vector<2x32xf32>
    %163 = vector.extract_strided_slice %159 {offsets = [0, 32], sizes = [2, 32], strides = [1, 1]} : vector<2x96xf32> to vector<2x32xf32>
    %164 = vector.extract_strided_slice %159 {offsets = [0, 64], sizes = [2, 32], strides = [1, 1]} : vector<2x96xf32> to vector<2x32xf32>
    %165 = arith.mulf %163, %124 : vector<2x32xf32>
    %166 = arith.mulf %162, %161 : vector<2x32xf32>
    %167 = arith.addf %165, %166 : vector<2x32xf32>
    %168 = math.tanh %167 : vector<2x32xf32>
    %169 = arith.mulf %164, %168 : vector<2x32xf32>
    %c0_62 = arith.constant 0 : index
    %c0_63 = arith.constant 0 : index
    %170 = vector.load %arg11[%c0_62, %c0_63] : memref<2x64xf32, #tpu.memory_space<vmem>>, vector<2x32xf32>
    tpu.vector_store %arg11[%c0_62, %c0_63], %169 {strides = array<i32>} : memref<2x64xf32, #tpu.memory_space<vmem>>, vector<2x32xf32>,
    %c0_64 = arith.constant 0 : index
    %c32_65 = arith.constant 32 : index
    %171 = vector.load %arg11[%c0_64, %c32_65] : memref<2x64xf32, #tpu.memory_space<vmem>>, vector<2x32xf32>
    tpu.vector_store %arg11[%c0_64, %c32_65], %147 {strides = array<i32>} : memref<2x64xf32, #tpu.memory_space<vmem>>, vector<2x32xf32>,
    %c0_66 = arith.constant 0 : index
    %c0_67 = arith.constant 0 : index
    %172 = vector.load %arg11[%c0_66, %c0_67] : memref<2x64xf32, #tpu.memory_space<vmem>>, vector<2x64xf32>
    %cst_68 = arith.constant dense<0.000000e+00> : vector<2x128xf32>
    %173 = tpu.matmul %172, %11, %cst_68 {dimension_numbers = #tpu.dot_dimension_numbers<[1], [0], [0], [1], [0, 0, 1, 1], [], []>} : vector<2x64xf32>, vector<64x128xf32>, vector<2x128xf32> -> vector<2x128xf32>
    %174 = arith.addf %173, %14 : vector<2x128xf32>
    %175 = vector.extract_strided_slice %174 {offsets = [0, 0], sizes = [2, 96], strides = [1, 1]} : vector<2x128xf32> to vector<2x96xf32>
    %176 = arith.negf %175 : vector<2x96xf32>
    %177 = math.exp %176 : vector<2x96xf32>
    %cst_69 = arith.constant 1.000000e+00 : f32
    %178 = vector.broadcast %cst_69 : f32 to vector<2x96xf32>
    %179 = arith.addf %178, %177 : vector<2x96xf32>
    %180 = arith.divf %178, %179 : vector<2x96xf32>
    %181 = vector.extract_strided_slice %174 {offsets = [0, 96], sizes = [2, 32], strides = [1, 1]} : vector<2x128xf32> to vector<2x32xf32>
    %182 = math.tanh %181 : vector<2x32xf32>
    %183 = vector.extract_strided_slice %180 {offsets = [0, 0], sizes = [2, 32], strides = [1, 1]} : vector<2x96xf32> to vector<2x32xf32>
    %184 = vector.extract_strided_slice %180 {offsets = [0, 32], sizes = [2, 32], strides = [1, 1]} : vector<2x96xf32> to vector<2x32xf32>
    %185 = vector.extract_strided_slice %180 {offsets = [0, 64], sizes = [2, 32], strides = [1, 1]} : vector<2x96xf32> to vector<2x32xf32>
    %186 = arith.mulf %184, %145 : vector<2x32xf32>
    %187 = arith.mulf %183, %182 : vector<2x32xf32>
    %188 = arith.addf %186, %187 : vector<2x32xf32>
    %189 = math.tanh %188 : vector<2x32xf32>
    %190 = arith.mulf %185, %189 : vector<2x32xf32>
    %c4_i32 = arith.constant 4 : i32
    %c2_i32_70 = arith.constant 2 : i32
    %191 = arith.muli %c4_i32, %c2_i32_70 : i32
    %192 = tpu.assume_multiple %191, 2 : i32
    %193 = arith.index_cast %192 : i32 to index
    %c0_71 = arith.constant 0 : index
    %194 = vector.load %arg10[%193, %c0_71] : memref<16x128xf32, #tpu.memory_space<vmem>>, vector<2x128xf32>
    %cst_72 = arith.constant dense<0.000000e+00> : vector<2x128xf32>
    %195 = tpu.matmul %169, %10, %cst_72 {dimension_numbers = #tpu.dot_dimension_numbers<[1], [0], [0], [1], [0, 0, 1, 1], [], []>} : vector<2x32xf32>, vector<32x128xf32>, vector<2x128xf32> -> vector<2x128xf32>
    %196 = arith.addf %194, %195 : vector<2x128xf32>
    %197 = vector.extract_strided_slice %196 {offsets = [0, 0], sizes = [2, 96], strides = [1, 1]} : vector<2x128xf32> to vector<2x96xf32>
    %198 = arith.negf %197 : vector<2x96xf32>
    %199 = math.exp %198 : vector<2x96xf32>
    %cst_73 = arith.constant 1.000000e+00 : f32
    %200 = vector.broadcast %cst_73 : f32 to vector<2x96xf32>
    %201 = arith.addf %200, %199 : vector<2x96xf32>
    %202 = arith.divf %200, %201 : vector<2x96xf32>
    %203 = vector.extract_strided_slice %196 {offsets = [0, 96], sizes = [2, 32], strides = [1, 1]} : vector<2x128xf32> to vector<2x32xf32>
    %204 = math.tanh %203 : vector<2x32xf32>
    %205 = vector.extract_strided_slice %202 {offsets = [0, 0], sizes = [2, 32], strides = [1, 1]} : vector<2x96xf32> to vector<2x32xf32>
    %206 = vector.extract_strided_slice %202 {offsets = [0, 32], sizes = [2, 32], strides = [1, 1]} : vector<2x96xf32> to vector<2x32xf32>
    %207 = vector.extract_strided_slice %202 {offsets = [0, 64], sizes = [2, 32], strides = [1, 1]} : vector<2x96xf32> to vector<2x32xf32>
    %208 = arith.mulf %206, %167 : vector<2x32xf32>
    %209 = arith.mulf %205, %204 : vector<2x32xf32>
    %210 = arith.addf %208, %209 : vector<2x32xf32>
    %211 = math.tanh %210 : vector<2x32xf32>
    %212 = arith.mulf %207, %211 : vector<2x32xf32>
    %c0_74 = arith.constant 0 : index
    %c0_75 = arith.constant 0 : index
    %213 = vector.load %arg11[%c0_74, %c0_75] : memref<2x64xf32, #tpu.memory_space<vmem>>, vector<2x32xf32>
    tpu.vector_store %arg11[%c0_74, %c0_75], %212 {strides = array<i32>} : memref<2x64xf32, #tpu.memory_space<vmem>>, vector<2x32xf32>,
    %c0_76 = arith.constant 0 : index
    %c32_77 = arith.constant 32 : index
    %214 = vector.load %arg11[%c0_76, %c32_77] : memref<2x64xf32, #tpu.memory_space<vmem>>, vector<2x32xf32>
    tpu.vector_store %arg11[%c0_76, %c32_77], %190 {strides = array<i32>} : memref<2x64xf32, #tpu.memory_space<vmem>>, vector<2x32xf32>,
    %c0_78 = arith.constant 0 : index
    %c0_79 = arith.constant 0 : index
    %215 = vector.load %arg11[%c0_78, %c0_79] : memref<2x64xf32, #tpu.memory_space<vmem>>, vector<2x64xf32>
    %cst_80 = arith.constant dense<0.000000e+00> : vector<2x128xf32>
    %216 = tpu.matmul %215, %11, %cst_80 {dimension_numbers = #tpu.dot_dimension_numbers<[1], [0], [0], [1], [0, 0, 1, 1], [], []>} : vector<2x64xf32>, vector<64x128xf32>, vector<2x128xf32> -> vector<2x128xf32>
    %217 = arith.addf %216, %14 : vector<2x128xf32>
    %218 = vector.extract_strided_slice %217 {offsets = [0, 0], sizes = [2, 96], strides = [1, 1]} : vector<2x128xf32> to vector<2x96xf32>
    %219 = arith.negf %218 : vector<2x96xf32>
    %220 = math.exp %219 : vector<2x96xf32>
    %cst_81 = arith.constant 1.000000e+00 : f32
    %221 = vector.broadcast %cst_81 : f32 to vector<2x96xf32>
    %222 = arith.addf %221, %220 : vector<2x96xf32>
    %223 = arith.divf %221, %222 : vector<2x96xf32>
    %224 = vector.extract_strided_slice %217 {offsets = [0, 96], sizes = [2, 32], strides = [1, 1]} : vector<2x128xf32> to vector<2x32xf32>
    %225 = math.tanh %224 : vector<2x32xf32>
    %226 = vector.extract_strided_slice %223 {offsets = [0, 0], sizes = [2, 32], strides = [1, 1]} : vector<2x96xf32> to vector<2x32xf32>
    %227 = vector.extract_strided_slice %223 {offsets = [0, 32], sizes = [2, 32], strides = [1, 1]} : vector<2x96xf32> to vector<2x32xf32>
    %228 = vector.extract_strided_slice %223 {offsets = [0, 64], sizes = [2, 32], strides = [1, 1]} : vector<2x96xf32> to vector<2x32xf32>
    %229 = arith.mulf %227, %188 : vector<2x32xf32>
    %230 = arith.mulf %226, %225 : vector<2x32xf32>
    %231 = arith.addf %229, %230 : vector<2x32xf32>
    %232 = math.tanh %231 : vector<2x32xf32>
    %233 = arith.mulf %228, %232 : vector<2x32xf32>
    %c5_i32 = arith.constant 5 : i32
    %c2_i32_82 = arith.constant 2 : i32
    %234 = arith.muli %c5_i32, %c2_i32_82 : i32
    %235 = tpu.assume_multiple %234, 2 : i32
    %236 = arith.index_cast %235 : i32 to index
    %c0_83 = arith.constant 0 : index
    %237 = vector.load %arg10[%236, %c0_83] : memref<16x128xf32, #tpu.memory_space<vmem>>, vector<2x128xf32>
    %cst_84 = arith.constant dense<0.000000e+00> : vector<2x128xf32>
    %238 = tpu.matmul %212, %10, %cst_84 {dimension_numbers = #tpu.dot_dimension_numbers<[1], [0], [0], [1], [0, 0, 1, 1], [], []>} : vector<2x32xf32>, vector<32x128xf32>, vector<2x128xf32> -> vector<2x128xf32>
    %239 = arith.addf %237, %238 : vector<2x128xf32>
    %240 = vector.extract_strided_slice %239 {offsets = [0, 0], sizes = [2, 96], strides = [1, 1]} : vector<2x128xf32> to vector<2x96xf32>
    %241 = arith.negf %240 : vector<2x96xf32>
    %242 = math.exp %241 : vector<2x96xf32>
    %cst_85 = arith.constant 1.000000e+00 : f32
    %243 = vector.broadcast %cst_85 : f32 to vector<2x96xf32>
    %244 = arith.addf %243, %242 : vector<2x96xf32>
    %245 = arith.divf %243, %244 : vector<2x96xf32>
    %246 = vector.extract_strided_slice %239 {offsets = [0, 96], sizes = [2, 32], strides = [1, 1]} : vector<2x128xf32> to vector<2x32xf32>
    %247 = math.tanh %246 : vector<2x32xf32>
    %248 = vector.extract_strided_slice %245 {offsets = [0, 0], sizes = [2, 32], strides = [1, 1]} : vector<2x96xf32> to vector<2x32xf32>
    %249 = vector.extract_strided_slice %245 {offsets = [0, 32], sizes = [2, 32], strides = [1, 1]} : vector<2x96xf32> to vector<2x32xf32>
    %250 = vector.extract_strided_slice %245 {offsets = [0, 64], sizes = [2, 32], strides = [1, 1]} : vector<2x96xf32> to vector<2x32xf32>
    %251 = arith.mulf %249, %210 : vector<2x32xf32>
    %252 = arith.mulf %248, %247 : vector<2x32xf32>
    %253 = arith.addf %251, %252 : vector<2x32xf32>
    %254 = math.tanh %253 : vector<2x32xf32>
    %255 = arith.mulf %250, %254 : vector<2x32xf32>
    %c0_86 = arith.constant 0 : index
    %c0_87 = arith.constant 0 : index
    %256 = vector.load %arg11[%c0_86, %c0_87] : memref<2x64xf32, #tpu.memory_space<vmem>>, vector<2x32xf32>
    tpu.vector_store %arg11[%c0_86, %c0_87], %255 {strides = array<i32>} : memref<2x64xf32, #tpu.memory_space<vmem>>, vector<2x32xf32>,
    %c0_88 = arith.constant 0 : index
    %c32_89 = arith.constant 32 : index
    %257 = vector.load %arg11[%c0_88, %c32_89] : memref<2x64xf32, #tpu.memory_space<vmem>>, vector<2x32xf32>
    tpu.vector_store %arg11[%c0_88, %c32_89], %233 {strides = array<i32>} : memref<2x64xf32, #tpu.memory_space<vmem>>, vector<2x32xf32>,
    %c0_90 = arith.constant 0 : index
    %c0_91 = arith.constant 0 : index
    %258 = vector.load %arg11[%c0_90, %c0_91] : memref<2x64xf32, #tpu.memory_space<vmem>>, vector<2x64xf32>
    %cst_92 = arith.constant dense<0.000000e+00> : vector<2x128xf32>
    %259 = tpu.matmul %258, %11, %cst_92 {dimension_numbers = #tpu.dot_dimension_numbers<[1], [0], [0], [1], [0, 0, 1, 1], [], []>} : vector<2x64xf32>, vector<64x128xf32>, vector<2x128xf32> -> vector<2x128xf32>
    %260 = arith.addf %259, %14 : vector<2x128xf32>
    %261 = vector.extract_strided_slice %260 {offsets = [0, 0], sizes = [2, 96], strides = [1, 1]} : vector<2x128xf32> to vector<2x96xf32>
    %262 = arith.negf %261 : vector<2x96xf32>
    %263 = math.exp %262 : vector<2x96xf32>
    %cst_93 = arith.constant 1.000000e+00 : f32
    %264 = vector.broadcast %cst_93 : f32 to vector<2x96xf32>
    %265 = arith.addf %264, %263 : vector<2x96xf32>
    %266 = arith.divf %264, %265 : vector<2x96xf32>
    %267 = vector.extract_strided_slice %260 {offsets = [0, 96], sizes = [2, 32], strides = [1, 1]} : vector<2x128xf32> to vector<2x32xf32>
    %268 = math.tanh %267 : vector<2x32xf32>
    %269 = vector.extract_strided_slice %266 {offsets = [0, 0], sizes = [2, 32], strides = [1, 1]} : vector<2x96xf32> to vector<2x32xf32>
    %270 = vector.extract_strided_slice %266 {offsets = [0, 32], sizes = [2, 32], strides = [1, 1]} : vector<2x96xf32> to vector<2x32xf32>
    %271 = vector.extract_strided_slice %266 {offsets = [0, 64], sizes = [2, 32], strides = [1, 1]} : vector<2x96xf32> to vector<2x32xf32>
    %272 = arith.mulf %270, %231 : vector<2x32xf32>
    %273 = arith.mulf %269, %268 : vector<2x32xf32>
    %274 = arith.addf %272, %273 : vector<2x32xf32>
    %275 = math.tanh %274 : vector<2x32xf32>
    %276 = arith.mulf %271, %275 : vector<2x32xf32>
    %c6_i32 = arith.constant 6 : i32
    %c2_i32_94 = arith.constant 2 : i32
    %277 = arith.muli %c6_i32, %c2_i32_94 : i32
    %278 = tpu.assume_multiple %277, 2 : i32
    %279 = arith.index_cast %278 : i32 to index
    %c0_95 = arith.constant 0 : index
    %280 = vector.load %arg10[%279, %c0_95] : memref<16x128xf32, #tpu.memory_space<vmem>>, vector<2x128xf32>
    %cst_96 = arith.constant dense<0.000000e+00> : vector<2x128xf32>
    %281 = tpu.matmul %255, %10, %cst_96 {dimension_numbers = #tpu.dot_dimension_numbers<[1], [0], [0], [1], [0, 0, 1, 1], [], []>} : vector<2x32xf32>, vector<32x128xf32>, vector<2x128xf32> -> vector<2x128xf32>
    %282 = arith.addf %280, %281 : vector<2x128xf32>
    %283 = vector.extract_strided_slice %282 {offsets = [0, 0], sizes = [2, 96], strides = [1, 1]} : vector<2x128xf32> to vector<2x96xf32>
    %284 = arith.negf %283 : vector<2x96xf32>
    %285 = math.exp %284 : vector<2x96xf32>
    %cst_97 = arith.constant 1.000000e+00 : f32
    %286 = vector.broadcast %cst_97 : f32 to vector<2x96xf32>
    %287 = arith.addf %286, %285 : vector<2x96xf32>
    %288 = arith.divf %286, %287 : vector<2x96xf32>
    %289 = vector.extract_strided_slice %282 {offsets = [0, 96], sizes = [2, 32], strides = [1, 1]} : vector<2x128xf32> to vector<2x32xf32>
    %290 = math.tanh %289 : vector<2x32xf32>
    %291 = vector.extract_strided_slice %288 {offsets = [0, 0], sizes = [2, 32], strides = [1, 1]} : vector<2x96xf32> to vector<2x32xf32>
    %292 = vector.extract_strided_slice %288 {offsets = [0, 32], sizes = [2, 32], strides = [1, 1]} : vector<2x96xf32> to vector<2x32xf32>
    %293 = vector.extract_strided_slice %288 {offsets = [0, 64], sizes = [2, 32], strides = [1, 1]} : vector<2x96xf32> to vector<2x32xf32>
    %294 = arith.mulf %292, %253 : vector<2x32xf32>
    %295 = arith.mulf %291, %290 : vector<2x32xf32>
    %296 = arith.addf %294, %295 : vector<2x32xf32>
    %297 = math.tanh %296 : vector<2x32xf32>
    %298 = arith.mulf %293, %297 : vector<2x32xf32>
    %c0_98 = arith.constant 0 : index
    %c0_99 = arith.constant 0 : index
    %299 = vector.load %arg11[%c0_98, %c0_99] : memref<2x64xf32, #tpu.memory_space<vmem>>, vector<2x32xf32>
    tpu.vector_store %arg11[%c0_98, %c0_99], %298 {strides = array<i32>} : memref<2x64xf32, #tpu.memory_space<vmem>>, vector<2x32xf32>,
    %c0_100 = arith.constant 0 : index
    %c32_101 = arith.constant 32 : index
    %300 = vector.load %arg11[%c0_100, %c32_101] : memref<2x64xf32, #tpu.memory_space<vmem>>, vector<2x32xf32>
    tpu.vector_store %arg11[%c0_100, %c32_101], %276 {strides = array<i32>} : memref<2x64xf32, #tpu.memory_space<vmem>>, vector<2x32xf32>,
    %c0_102 = arith.constant 0 : index
    %c0_103 = arith.constant 0 : index
    %301 = vector.load %arg11[%c0_102, %c0_103] : memref<2x64xf32, #tpu.memory_space<vmem>>, vector<2x64xf32>
    %cst_104 = arith.constant dense<0.000000e+00> : vector<2x128xf32>
    %302 = tpu.matmul %301, %11, %cst_104 {dimension_numbers = #tpu.dot_dimension_numbers<[1], [0], [0], [1], [0, 0, 1, 1], [], []>} : vector<2x64xf32>, vector<64x128xf32>, vector<2x128xf32> -> vector<2x128xf32>
    %303 = arith.addf %302, %14 : vector<2x128xf32>
    %304 = vector.extract_strided_slice %303 {offsets = [0, 0], sizes = [2, 96], strides = [1, 1]} : vector<2x128xf32> to vector<2x96xf32>
    %305 = arith.negf %304 : vector<2x96xf32>
    %306 = math.exp %305 : vector<2x96xf32>
    %cst_105 = arith.constant 1.000000e+00 : f32
    %307 = vector.broadcast %cst_105 : f32 to vector<2x96xf32>
    %308 = arith.addf %307, %306 : vector<2x96xf32>
    %309 = arith.divf %307, %308 : vector<2x96xf32>
    %310 = vector.extract_strided_slice %303 {offsets = [0, 96], sizes = [2, 32], strides = [1, 1]} : vector<2x128xf32> to vector<2x32xf32>
    %311 = math.tanh %310 : vector<2x32xf32>
    %312 = vector.extract_strided_slice %309 {offsets = [0, 0], sizes = [2, 32], strides = [1, 1]} : vector<2x96xf32> to vector<2x32xf32>
    %313 = vector.extract_strided_slice %309 {offsets = [0, 32], sizes = [2, 32], strides = [1, 1]} : vector<2x96xf32> to vector<2x32xf32>
    %314 = vector.extract_strided_slice %309 {offsets = [0, 64], sizes = [2, 32], strides = [1, 1]} : vector<2x96xf32> to vector<2x32xf32>
    %315 = arith.mulf %313, %274 : vector<2x32xf32>
    %316 = arith.mulf %312, %311 : vector<2x32xf32>
    %317 = arith.addf %315, %316 : vector<2x32xf32>
    %318 = math.tanh %317 : vector<2x32xf32>
    %319 = arith.mulf %314, %318 : vector<2x32xf32>
    %c7_i32 = arith.constant 7 : i32
    %c2_i32_106 = arith.constant 2 : i32
    %320 = arith.muli %c7_i32, %c2_i32_106 : i32
    %321 = tpu.assume_multiple %320, 2 : i32
    %322 = arith.index_cast %321 : i32 to index
    %c0_107 = arith.constant 0 : index
    %323 = vector.load %arg10[%322, %c0_107] : memref<16x128xf32, #tpu.memory_space<vmem>>, vector<2x128xf32>
    %cst_108 = arith.constant dense<0.000000e+00> : vector<2x128xf32>
    %324 = tpu.matmul %298, %10, %cst_108 {dimension_numbers = #tpu.dot_dimension_numbers<[1], [0], [0], [1], [0, 0, 1, 1], [], []>} : vector<2x32xf32>, vector<32x128xf32>, vector<2x128xf32> -> vector<2x128xf32>
    %325 = arith.addf %323, %324 : vector<2x128xf32>
    %326 = vector.extract_strided_slice %325 {offsets = [0, 0], sizes = [2, 96], strides = [1, 1]} : vector<2x128xf32> to vector<2x96xf32>
    %327 = arith.negf %326 : vector<2x96xf32>
    %328 = math.exp %327 : vector<2x96xf32>
    %cst_109 = arith.constant 1.000000e+00 : f32
    %329 = vector.broadcast %cst_109 : f32 to vector<2x96xf32>
    %330 = arith.addf %329, %328 : vector<2x96xf32>
    %331 = arith.divf %329, %330 : vector<2x96xf32>
    %332 = vector.extract_strided_slice %325 {offsets = [0, 96], sizes = [2, 32], strides = [1, 1]} : vector<2x128xf32> to vector<2x32xf32>
    %333 = math.tanh %332 : vector<2x32xf32>
    %334 = vector.extract_strided_slice %331 {offsets = [0, 0], sizes = [2, 32], strides = [1, 1]} : vector<2x96xf32> to vector<2x32xf32>
    %335 = vector.extract_strided_slice %331 {offsets = [0, 32], sizes = [2, 32], strides = [1, 1]} : vector<2x96xf32> to vector<2x32xf32>
    %336 = vector.extract_strided_slice %331 {offsets = [0, 64], sizes = [2, 32], strides = [1, 1]} : vector<2x96xf32> to vector<2x32xf32>
    %337 = arith.mulf %335, %296 : vector<2x32xf32>
    %338 = arith.mulf %334, %333 : vector<2x32xf32>
    %339 = arith.addf %337, %338 : vector<2x32xf32>
    %340 = math.tanh %339 : vector<2x32xf32>
    %341 = arith.mulf %336, %340 : vector<2x32xf32>
    %c0_110 = arith.constant 0 : index
    %c0_111 = arith.constant 0 : index
    %342 = vector.load %arg11[%c0_110, %c0_111] : memref<2x64xf32, #tpu.memory_space<vmem>>, vector<2x32xf32>
    tpu.vector_store %arg11[%c0_110, %c0_111], %341 {strides = array<i32>} : memref<2x64xf32, #tpu.memory_space<vmem>>, vector<2x32xf32>,
    %c0_112 = arith.constant 0 : index
    %c32_113 = arith.constant 32 : index
    %343 = vector.load %arg11[%c0_112, %c32_113] : memref<2x64xf32, #tpu.memory_space<vmem>>, vector<2x32xf32>
    tpu.vector_store %arg11[%c0_112, %c32_113], %319 {strides = array<i32>} : memref<2x64xf32, #tpu.memory_space<vmem>>, vector<2x32xf32>,
    %c0_114 = arith.constant 0 : index
    %c0_115 = arith.constant 0 : index
    %344 = vector.load %arg11[%c0_114, %c0_115] : memref<2x64xf32, #tpu.memory_space<vmem>>, vector<2x64xf32>
    %cst_116 = arith.constant dense<0.000000e+00> : vector<2x128xf32>
    %345 = tpu.matmul %344, %11, %cst_116 {dimension_numbers = #tpu.dot_dimension_numbers<[1], [0], [0], [1], [0, 0, 1, 1], [], []>} : vector<2x64xf32>, vector<64x128xf32>, vector<2x128xf32> -> vector<2x128xf32>
    %346 = arith.addf %345, %14 : vector<2x128xf32>
    %347 = vector.extract_strided_slice %346 {offsets = [0, 0], sizes = [2, 96], strides = [1, 1]} : vector<2x128xf32> to vector<2x96xf32>
    %348 = arith.negf %347 : vector<2x96xf32>
    %349 = math.exp %348 : vector<2x96xf32>
    %cst_117 = arith.constant 1.000000e+00 : f32
    %350 = vector.broadcast %cst_117 : f32 to vector<2x96xf32>
    %351 = arith.addf %350, %349 : vector<2x96xf32>
    %352 = arith.divf %350, %351 : vector<2x96xf32>
    %353 = vector.extract_strided_slice %346 {offsets = [0, 96], sizes = [2, 32], strides = [1, 1]} : vector<2x128xf32> to vector<2x32xf32>
    %354 = math.tanh %353 : vector<2x32xf32>
    %355 = vector.extract_strided_slice %352 {offsets = [0, 0], sizes = [2, 32], strides = [1, 1]} : vector<2x96xf32> to vector<2x32xf32>
    %356 = vector.extract_strided_slice %352 {offsets = [0, 32], sizes = [2, 32], strides = [1, 1]} : vector<2x96xf32> to vector<2x32xf32>
    %357 = vector.extract_strided_slice %352 {offsets = [0, 64], sizes = [2, 32], strides = [1, 1]} : vector<2x96xf32> to vector<2x32xf32>
    %358 = arith.mulf %356, %317 : vector<2x32xf32>
    %359 = arith.mulf %355, %354 : vector<2x32xf32>
    %360 = arith.addf %358, %359 : vector<2x32xf32>
    %361 = math.tanh %360 : vector<2x32xf32>
    %362 = arith.mulf %357, %361 : vector<2x32xf32>
    %c8_i32 = arith.constant 8 : i32
    %c0_118 = arith.constant 0 : index
    %c0_119 = arith.constant 0 : index
    %363 = vector.load %arg12[%c0_118, %c0_119] : memref<2x32xf32, #tpu.memory_space<vmem>>, vector<2x32xf32>
    tpu.vector_store %arg12[%c0_118, %c0_119], %341 {strides = array<i32>} : memref<2x32xf32, #tpu.memory_space<vmem>>, vector<2x32xf32>,
    %c0_120 = arith.constant 0 : index
    %c0_121 = arith.constant 0 : index
    %364 = vector.load %arg13[%c0_120, %c0_121] : memref<2x32xf32, #tpu.memory_space<vmem>>, vector<2x32xf32>
    tpu.vector_store %arg13[%c0_120, %c0_121], %339 {strides = array<i32>} : memref<2x32xf32, #tpu.memory_space<vmem>>, vector<2x32xf32>,
    %c0_122 = arith.constant 0 : index
    %c0_123 = arith.constant 0 : index
    %365 = vector.load %arg14[%c0_122, %c0_123] : memref<2x32xf32, #tpu.memory_space<vmem>>, vector<2x32xf32>
    tpu.vector_store %arg14[%c0_122, %c0_123], %362 {strides = array<i32>} : memref<2x32xf32, #tpu.memory_space<vmem>>, vector<2x32xf32>,
    %c0_124 = arith.constant 0 : index
    %c0_125 = arith.constant 0 : index
    %366 = vector.load %arg15[%c0_124, %c0_125] : memref<2x32xf32, #tpu.memory_space<vmem>>, vector<2x32xf32>
    tpu.vector_store %arg15[%c0_124, %c0_125], %360 {strides = array<i32>} : memref<2x32xf32, #tpu.memory_space<vmem>>, vector<2x32xf32>,
    %c0_i32_126 = arith.constant 0 : i32
    %367 = arith.cmpi eq, %arg0, %c0_i32_126 : i32
    %368 = arith.extui %367 : i1 to i32
    %c0_i32_127 = arith.constant 0 : i32
    %369 = arith.cmpi ne, %368, %c0_i32_127 : i32
    scf.if %369 {
      %c0_128 = arith.constant 0 : index
      %c0_129 = arith.constant 0 : index
      %370 = vector.load %arg7[%c0_128, %c0_129] : memref<32x20xf32, #tpu.memory_space<vmem>>, vector<32x20xf32>
      %cst_130 = arith.constant dense<0.000000e+00> : vector<2x20xf32>
      %371 = tpu.matmul %362, %370, %cst_130 {dimension_numbers = #tpu.dot_dimension_numbers<[1], [0], [0], [1], [0, 0, 1, 1], [], []>} : vector<2x32xf32>, vector<32x20xf32>, vector<2x20xf32> -> vector<2x20xf32>
      %c0_131 = arith.constant 0 : index
      %c0_132 = arith.constant 0 : index
      %372 = vector.load %arg8[%c0_131, %c0_132] : memref<1x20xf32, #tpu.memory_space<vmem>>, vector<1x20xf32>
      %373 = vector.broadcast %372 : vector<1x20xf32> to vector<2x20xf32>
      %374 = arith.addf %371, %373 : vector<2x20xf32>
      %c0_133 = arith.constant 0 : index
      %c0_134 = arith.constant 0 : index
      %375 = vector.load %arg9[%c0_133, %c0_134] : memref<2x20xf32, #tpu.memory_space<vmem>>, vector<2x20xf32>
      tpu.vector_store %arg9[%c0_133, %c0_134], %374 {strides = array<i32>} : memref<2x20xf32, #tpu.memory_space<vmem>>, vector<2x20xf32>,
    } else {
    }
    return
  }
  func.func @transform_0(%arg0: i32) -> (i32, i32) {
    %c0_i32 = arith.constant 0 : i32
    %c0_i32_0 = arith.constant 0 : i32
    return %arg0, %c0_i32 : i32, i32
  }
  func.func @transform_1(%arg0: i32) -> (i32, i32) {
    %c0_i32 = arith.constant 0 : i32
    %c0_i32_0 = arith.constant 0 : i32
    %c0_i32_1 = arith.constant 0 : i32
    return %c0_i32, %c0_i32_0 : i32, i32
  }
  func.func @transform_2(%arg0: i32) -> (i32, i32) {
    %c0_i32 = arith.constant 0 : i32
    %c0_i32_0 = arith.constant 0 : i32
    %c0_i32_1 = arith.constant 0 : i32
    return %c0_i32, %c0_i32_0 : i32, i32
  }
  func.func @transform_3(%arg0: i32) -> (i32, i32) {
    %c0_i32 = arith.constant 0 : i32
    %c0_i32_0 = arith.constant 0 : i32
    %c0_i32_1 = arith.constant 0 : i32
    return %c0_i32, %c0_i32_0 : i32, i32
  }
  func.func @transform_4(%arg0: i32) -> (i32, i32) {
    %c0_i32 = arith.constant 0 : i32
    %c0_i32_0 = arith.constant 0 : i32
    %c0_i32_1 = arith.constant 0 : i32
    return %c0_i32, %c0_i32_0 : i32, i32
  }
  func.func @transform_5(%arg0: i32) -> (i32, i32) {
    %c0_i32 = arith.constant 0 : i32
    %c0_i32_0 = arith.constant 0 : i32
    %c0_i32_1 = arith.constant 0 : i32
    return %c0_i32, %c0_i32_0 : i32, i32
  }
  func.func @transform_6(%arg0: i32) -> (i32, i32) {
    %c0_i32 = arith.constant 0 : i32
    %c0_i32_0 = arith.constant 0 : i32
    %c0_i32_1 = arith.constant 0 : i32
    return %c0_i32, %c0_i32_0 : i32, i32
  }
  func.func @transform_7(%arg0: i32) -> (i32, i32) {
    %c0_i32 = arith.constant 0 : i32
    %c0_i32_0 = arith.constant 0 : i32
    %c0_i32_1 = arith.constant 0 : i32
    return %c0_i32, %c0_i32_0 : i32, i32
  }
  func.func @transform_8(%arg0: i32) -> (i32, i32) {
    %c0_i32 = arith.constant 0 : i32
    %c0_i32_0 = arith.constant 0 : i32
    %c0_i32_1 = arith.constant 0 : i32
    return %c0_i32, %c0_i32_0 : i32, i32
  }
}

</mosaic_0001>

<llo_original>
// kernel: tpu_custom_call.1
$region0: #{tpu_custom_call.1}
  #allocation0 [shape = 'u32[]', space=smem, size = 0x4, offset = 0x4, fixed_abs, tag = 'smem constant byte address 0x4 - core index']
  #allocation1 [shape = 'u32[72,128]{1,0:T(1,128)}', space=vmem, size = 0x9000, scoped, tag = 'internal scratch']
  #allocation2 [shape = 'f32[16,128]{1,0:T(8,128)}', space=vmem, size = 0x2000, scoped, tag = 'scratch operand']
  #allocation3 [shape = 'f32[2,64]{1,0:T(2,128)}', space=vmem, size = 0x400, scoped, tag = 'scratch operand']
  #allocation4 [shape = 'f32[2,32]{1,0:T(2,128)}', space=vmem, size = 0x400, scoped, tag = 'scratch operand']
  #allocation5 [shape = 'f32[2,32]{1,0:T(2,128)}', space=vmem, size = 0x400, scoped, tag = 'scratch operand']
  #allocation6 [shape = 'f32[2,32]{1,0:T(2,128)}', space=vmem, size = 0x400, scoped, tag = 'scratch operand']
  #allocation7 [shape = 'f32[2,32]{1,0:T(2,128)}', space=vmem, size = 0x400, scoped, tag = 'scratch operand']
  %s0 = inlined_call_operand.vmem [shape: f32[16,64], index: 0, kind: input, shape index: {}]
  %s1 = inlined_call_operand.hbm [shape: f32[64,128], index: 1, kind: input, shape index: {}]
  %s2 = inlined_call_operand.vmem [shape: f32[32,128], index: 2, kind: input, shape index: {}]
  %s3 = inlined_call_operand.vmem [shape: f32[1,128], index: 3, kind: input, shape index: {}]
  %s4 = inlined_call_operand.hbm [shape: f32[64,128], index: 4, kind: input, shape index: {}]
  %s5 = inlined_call_operand.vmem [shape: f32[1,128], index: 5, kind: input, shape index: {}]
  %s6 = inlined_call_operand.vmem [shape: f32[32,20], index: 6, kind: input, shape index: {}]
  %s7 = inlined_call_operand.vmem [shape: f32[1,20], index: 7, kind: input, shape index: {}]
  %s8 = inlined_call_operand.hbm [shape: f32[2,20], index: 8, kind: output, shape index: {}]
  %s9 = sld [smem:[#allocation0]]
  $region58: #{tpu_custom_call.1} parent=0
    _
  %s11 = ssub.s32 1, %s9
  %s12 = scalar_select 0, %s11, %s9
  $region1: #{tpu_custom_call.1} parent=0
    #allocation8 [shape = 'u8[32768]{0}', space=vmem, size = 0x8000, scoped, tag = 'input window, operand 1, single buffered']
    #allocation9 [shape = 's32[1]{0}', space=sflag, size = 0x4, scoped, tag = 'scoped memory for tpu_custom_call.1']
    #allocation10 [shape = 's32[1]{0}', space=sflag, size = 0x4, scoped, tag = 'scoped memory for tpu_custom_call.1']
    #allocation11 [shape = 'u8[32768]{0}', space=vmem, size = 0x8000, scoped, tag = 'input window, operand 4, single buffered']
    #allocation12 [shape = 's32[1]{0}', space=sflag, size = 0x4, scoped, tag = 'scoped memory for tpu_custom_call.1']
    #allocation13 [shape = 'u8[1024]{0}', space=vmem, size = 0x400, scoped, tag = 'output window, operand 0, single buffered']
    %13 = vsyncpa [#allocation9], 0
    %14 = vsyncpa [#allocation12], 0
    %15 = vsyncpa [#allocation10], 0
    // Predicated region
    $region2: #{tpu_custom_call.1} parent=1 // pred_check
      _
    $region3: #{tpu_custom_call.1} parent=1 // pred_check_branch
      %17 = sbr.rel (0) target = $region5
    $region4: #{tpu_custom_call.1} parent=1 // pred_region
      _
    $region5: #{tpu_custom_call.1} parent=1 // pred_fallthru
      _
    // Predicated region
    $region6: #{tpu_custom_call.1} parent=1 // pred_check
      _
    $region7: #{tpu_custom_call.1} parent=1 // pred_check_branch
      %19 = sbr.rel (0) target = $region9
    $region8: #{tpu_custom_call.1} parent=1 // pred_region
      %21 = vsyncadd [#allocation9], 0
      %s22 = sshll.u32 %s1, 4
      %s23 = int_to_ptr.hbm [resolvable:$true] %s22
      %s24 = sshll.u32 [#allocation8], 4
      %s25 = int_to_ptr.vmem [resolvable:$true] %s24
      %30 = dma.hbm_to_vmem [thread:$0]  %s23, 1024, %s25, [#allocation9], 128, 128, 8
    $region9: #{tpu_custom_call.1} parent=1 // pred_fallthru
      _
    // Predicated region
    $region10: #{tpu_custom_call.1} parent=1 // pred_check
      _
    $region11: #{tpu_custom_call.1} parent=1 // pred_check_branch
      %32 = sbr.rel (0) target = $region13
    $region12: #{tpu_custom_call.1} parent=1 // pred_region
      _
    $region13: #{tpu_custom_call.1} parent=1 // pred_fallthru
      _
    // Predicated region
    $region14: #{tpu_custom_call.1} parent=1 // pred_check
      _
    $region15: #{tpu_custom_call.1} parent=1 // pred_check_branch
      %34 = sbr.rel (0) target = $region17
    $region16: #{tpu_custom_call.1} parent=1 // pred_region
      _
    $region17: #{tpu_custom_call.1} parent=1 // pred_fallthru
      _
    // Predicated region
    $region18: #{tpu_custom_call.1} parent=1 // pred_check
      _
    $region19: #{tpu_custom_call.1} parent=1 // pred_check_branch
      %36 = sbr.rel (0) target = $region21
    $region20: #{tpu_custom_call.1} parent=1 // pred_region
      %38 = vsyncadd [#allocation12], 0
      %s39 = sshll.u32 %s4, 4
      %s40 = int_to_ptr.hbm [resolvable:$true] %s39
      %s41 = sshll.u32 [#allocation11], 4
      %s42 = int_to_ptr.vmem [resolvable:$true] %s41
      %47 = dma.hbm_to_vmem [thread:$0]  %s40, 1024, %s42, [#allocation12], 128, 128, 8
    $region21: #{tpu_custom_call.1} parent=1 // pred_fallthru
      _
    // Predicated region
    $region22: #{tpu_custom_call.1} parent=1 // pred_check
      _
    $region23: #{tpu_custom_call.1} parent=1 // pred_check_branch
      %49 = sbr.rel (0) target = $region25
    $region24: #{tpu_custom_call.1} parent=1 // pred_region
      _
    $region25: #{tpu_custom_call.1} parent=1 // pred_fallthru
      _
    // Predicated region
    $region26: #{tpu_custom_call.1} parent=1 // pred_check
      _
    $region27: #{tpu_custom_call.1} parent=1 // pred_check_branch
      %51 = sbr.rel (0) target = $region29
    $region28: #{tpu_custom_call.1} parent=1 // pred_region
      _
    $region29: #{tpu_custom_call.1} parent=1 // pred_fallthru
      _
    // Predicated region
    $region30: #{tpu_custom_call.1} parent=1 // pred_check
      _
    $region31: #{tpu_custom_call.1} parent=1 // pred_check_branch
      %53 = sbr.rel (0) target = $region33
    $region32: #{tpu_custom_call.1} parent=1 // pred_region
      _
    $region33: #{tpu_custom_call.1} parent=1 // pred_fallthru
      _
    // Predicated region
    $region34: #{tpu_custom_call.1} parent=1 // pred_check
      _
    $region35: #{tpu_custom_call.1} parent=1 // pred_check_branch
      %55 = sbr.rel (0) target = $region37
    $region36: #{tpu_custom_call.1} parent=1 // pred_region
      %57 = dma.done [#allocation9], 1024
    $region37: #{tpu_custom_call.1} parent=1 // pred_fallthru
      _
    // Predicated region
    $region38: #{tpu_custom_call.1} parent=1 // pred_check
      _
    $region39: #{tpu_custom_call.1} parent=1 // pred_check_branch
      %59 = sbr.rel (0) target = $region41
    $region40: #{tpu_custom_call.1} parent=1 // pred_region
      %61 = dma.done [#allocation12], 1024
    $region41: #{tpu_custom_call.1} parent=1 // pred_fallthru
      _
    %p62 = scmp.eq.s32.totalorder 0, 0
    // Predicated region
    $region42: #{tpu_custom_call.1} parent=1 // pred_check
      %p63 = pneg %p62
    $region43: #{tpu_custom_call.1} parent=1 // pred_check_branch
      %65 = sbr.rel (%p63) target = $region45
    $region44: #{tpu_custom_call.1} parent=1 // pred_region
      %vm66 = vcmask 254976
      %67 = vst.msk [vmem:[#allocation4] sm:$0x3] %vm66, 0.0
      %68 = vst.msk [vmem:[#allocation5] sm:$0x3] %vm66, 0.0
      %69 = vst.msk [vmem:[#allocation6] sm:$0x3] %vm66, 0.0
      %70 = vst.msk [vmem:[#allocation7] sm:$0x3] %vm66, 0.0
    $region45: #{tpu_custom_call.1} parent=1 // pred_fallthru
      _
    %v71 = vld [vmem:[%s0] sm:$0xff]
    %v72 = vld [vmem:[%s0 + $0x8] sm:$0xff]
    %v73 = vld [vmem:[#allocation8] sm:$0xff]
    %v74 = vld [vmem:[#allocation8 + $0x8] sm:$0xff]
    %v75 = vld [vmem:[#allocation8 + $0x10] sm:$0xff]
    %v76 = vld [vmem:[#allocation8 + $0x18] sm:$0xff]
    %v77 = vld [vmem:[#allocation8 + $0x20] sm:$0xff]
    %v78 = vld [vmem:[#allocation8 + $0x28] sm:$0xff]
    %v79 = vld [vmem:[#allocation8 + $0x30] sm:$0xff]
    %v80 = vld [vmem:[#allocation8 + $0x38] sm:$0xff]
    %v81 = vld [vmem:[%s3] sm:$0x1]
    %v83 = vperm.slane %v81, 0
    %vm85 = vcmask 523264
    %v87 = vsel %vm85, %v71, 0
    %v90 = vsel %vm85, %v72, 0
    %92 = vmatpush.msra.mxu0 0.0
    %93 = vmatpush.msra.mxu0 0.0
    %94 = vmatpush.msra.mxu0 0.0
    %95 = vmatpush.msra.mxu0 0.0
    %96 = vmatpush.msra.mxu0 0.0
    %97 = vmatpush.msra.mxu0 0.0
    %98 = vmatpush.msra.mxu0 0.0
    %99 = vmatpush.msra.mxu0 0.0
    %100 = vmatpush.msra.mxu0 %v80
    %101 = vmatpush.msra.mxu0 %v79
    %102 = vmatpush.msra.mxu0 %v78
    %103 = vmatpush.msra.mxu0 %v77
    %104 = vmatpush.msra.mxu0 %v76
    %105 = vmatpush.msra.mxu0 %v75
    %106 = vmatpush.msra.mxu0 %v74
    %107 = vmatpush.msra.mxu0 %v73
    %108 = vmatmul.f32.gmra.mxu0 %v87
    %v109 = vpop.f32.mrf.mxu0
    %v110 = vadd.f32 %v83, %v109
    %111 = vmatmul.f32.gmra.mxu0 %v90
    %v112 = vpop.f32.mrf.mxu0
    %v113 = vadd.f32 %v83, %v112
    %114 = vdwg.mxu0
    %115 = vst [vmem:[#allocation2] sm:$0xff] %v110
    %116 = vst [vmem:[#allocation2 + $0x8] sm:$0xff] %v113
    %v117 = vld [vmem:[%s2] sm:$0xff]
    %v118 = vld [vmem:[%s2 + $0x8] sm:$0xff]
    %v119 = vld [vmem:[%s2 + $0x10] sm:$0xff]
    %v120 = vld [vmem:[%s2 + $0x18] sm:$0xff]
    %v121 = vld [vmem:[#allocation11] sm:$0xff]
    %v122 = vld [vmem:[#allocation11 + $0x8] sm:$0xff]
    %v123 = vld [vmem:[#allocation11 + $0x10] sm:$0xff]
    %v124 = vld [vmem:[#allocation11 + $0x18] sm:$0xff]
    %v125 = vld [vmem:[#allocation11 + $0x20] sm:$0xff]
    %v126 = vld [vmem:[#allocation11 + $0x28] sm:$0xff]
    %v127 = vld [vmem:[#allocation11 + $0x30] sm:$0xff]
    %v128 = vld [vmem:[#allocation11 + $0x38] sm:$0xff]
    %v129 = vld [vmem:[%s5] sm:$0x1]
    %v131 = vperm.slane %v129, 0
    %v133 = vld [vmem:[#allocation4] sm:$0x3]
    %v134 = vld [vmem:[#allocation5] sm:$0x3]
    %v135 = vld [vmem:[#allocation6] sm:$0x3]
    %v136 = vld [vmem:[#allocation7] sm:$0x3]
    %v137 = vld [vmem:[#allocation2] sm:$0x3]
    %vm138 = vcmask 261120
    %v140 = vsel %vm138, %v133, 0
    %142 = vmatpush.msra.mxu0 0.0
    %143 = vmatpush.msra.mxu0 0.0
    %144 = vmatpush.msra.mxu0 0.0
    %145 = vmatpush.msra.mxu0 0.0
    %146 = vmatpush.msra.mxu0 0.0
    %147 = vmatpush.msra.mxu0 0.0
    %148 = vmatpush.msra.mxu0 0.0
    %149 = vmatpush.msra.mxu0 0.0
    %150 = vmatpush.msra.mxu0 0.0
    %151 = vmatpush.msra.mxu0 0.0
    %152 = vmatpush.msra.mxu0 0.0
    %153 = vmatpush.msra.mxu0 0.0
    %154 = vmatpush.msra.mxu0 %v120
    %155 = vmatpush.msra.mxu0 %v119
    %156 = vmatpush.msra.mxu0 %v118
    %157 = vmatpush.msra.mxu0 %v117
    %158 = vmatmul.f32.gmra.mxu0 %v140
    %v159 = vpop.f32.mrf.mxu0
    %v160 = vadd.f32 0.0, %v159
    %161 = vdwg.mxu0
    %v162 = vadd.f32 %v137, %v160
    %v163 = vxor.u32 %v162, 2147483648
    %v164 = vmul.f32 %v163, 1.442695
    %v165 = vpow.pop %v164
    %v166 = vadd.f32 %v165, 1.0
    %v167 = vrcp.pop %v166
    %v168 = vmul.f32 %v166, %v167
    %v169 = vsub.f32 1.0, %v168
    %v170 = vmul.f32 %v167, %v169
    %v171 = vadd.f32 %v167, %v170
    %vm172 = vweird.f32 %v166
    %vm173 = vweird.f32 %v167
    %vm174 = vmor %vm172, %vm173
    %v175 = vsel %vm174, %v167, %v171
    %v176 = vand.u32 2147483647, %v166
    %vm177 = vcmp.eq.f32.partialorder %v176, 8.507059e+37
    %v178 = vand.u32 %v166, 2147483648
    %v179 = vor.u32 1.1754944e-38, %v178
    %v180 = vsel %vm177, %v179, %v175
    %v181 = vmul.f32 1.0, %v180
    %v182 = vtanh.pop %v162
    %184 = vrot.lane.b32.xlu0 %v134, 32
    %v185 = vpop.permute.xlu0 %184
    %v187 = vmul.f32 %v181, %v185
    %189 = vrot.lane.b32.xlu0 %v182, 32
    %v190 = vpop.permute.xlu0 %189
    %v192 = vmul.f32 %v181, %v190
    %194 = vrot.lane.b32.xlu0 %v192, 32
    %v195 = vpop.permute.xlu0 %194
    %v197 = vadd.f32 %v187, %v195
    %v198 = vtanh.pop %v197
    %200 = vrot.lane.b32.xlu0 %v198, 32
    %v201 = vpop.permute.xlu0 %200
    %v203 = vmul.f32 %v181, %v201
    %205 = vrot.lane.b32.xlu0 %v203, 64
    %v206 = vpop.permute.xlu0 %205
    %vm208 = vcmask 254976
    %209 = vst.msk [vmem:[#allocation3] sm:$0x3] %vm208, %v206
    %211 = vrot.lane.b32.xlu0 %v135, 32
    %v212 = vpop.permute.xlu0 %211
    %vm214 = vcmask 517376
    %215 = vst.msk [vmem:[#allocation3] sm:$0x3] %vm214, %v212
    %v216 = vld [vmem:[#allocation3] sm:$0x3]
    %v218 = vsel %vm85, %v216, 0
    %220 = vmatpush.msra.mxu0 0.0
    %221 = vmatpush.msra.mxu0 0.0
    %222 = vmatpush.msra.mxu0 0.0
    %223 = vmatpush.msra.mxu0 0.0
    %224 = vmatpush.msra.mxu0 0.0
    %225 = vmatpush.msra.mxu0 0.0
    %226 = vmatpush.msra.mxu0 0.0
    %227 = vmatpush.msra.mxu0 0.0
    %228 = vmatpush.msra.mxu0 %v128
    %229 = vmatpush.msra.mxu0 %v127
    %230 = vmatpush.msra.mxu0 %v126
    %231 = vmatpush.msra.mxu0 %v125
    %232 = vmatpush.msra.mxu0 %v124
    %233 = vmatpush.msra.mxu0 %v123
    %234 = vmatpush.msra.mxu0 %v122
    %235 = vmatpush.msra.mxu0 %v121
    %236 = vmatmul.f32.gmra.mxu0 %v218
    %v237 = vpop.f32.mrf.mxu0
    %v238 = vadd.f32 %v131, %v237
    %239 = vdwg.mxu0
    %v240 = vxor.u32 %v238, 2147483648
    %v241 = vmul.f32 %v240, 1.442695
    %v242 = vpow.pop %v241
    %v243 = vadd.f32 %v242, 1.0
    %v244 = vrcp.pop %v243
    %v245 = vmul.f32 %v243, %v244
    %v246 = vsub.f32 1.0, %v245
    %v247 = vmul.f32 %v244, %v246
    %v248 = vadd.f32 %v244, %v247
    %vm249 = vweird.f32 %v243
    %vm250 = vweird.f32 %v244
    %vm251 = vmor %vm249, %vm250
    %v252 = vsel %vm251, %v244, %v248
    %v253 = vand.u32 2147483647, %v243
    %vm254 = vcmp.eq.f32.partialorder %v253, 8.507059e+37
    %v255 = vand.u32 %v243, 2147483648
    %v256 = vor.u32 1.1754944e-38, %v255
    %v257 = vsel %vm254, %v256, %v252
    %v258 = vmul.f32 1.0, %v257
    %v259 = vtanh.pop %v238
    %261 = vrot.lane.b32.xlu0 %v136, 32
    %v262 = vpop.permute.xlu0 %261
    %v264 = vmul.f32 %v258, %v262
    %266 = vrot.lane.b32.xlu0 %v259, 32
    %v267 = vpop.permute.xlu0 %266
    %v269 = vmul.f32 %v258, %v267
    %271 = vrot.lane.b32.xlu0 %v269, 32
    %v272 = vpop.permute.xlu0 %271
    %v274 = vadd.f32 %v264, %v272
    %v275 = vtanh.pop %v274
    %277 = vrot.lane.b32.xlu0 %v275, 32
    %v278 = vpop.permute.xlu0 %277
    %v280 = vmul.f32 %v258, %v278
    %s281 = scalar_lea.vmem [#allocation2], 2
    %v282 = vld [vmem:[%s281] sm:$0x3]
    %v283 = vsel %vm138, %v206, 0
    %285 = vmatpush.msra.mxu0 0.0
    %286 = vmatpush.msra.mxu0 0.0
    %287 = vmatpush.msra.mxu0 0.0
    %288 = vmatpush.msra.mxu0 0.0
    %289 = vmatpush.msra.mxu0 0.0
    %290 = vmatpush.msra.mxu0 0.0
    %291 = vmatpush.msra.mxu0 0.0
    %292 = vmatpush.msra.mxu0 0.0
    %293 = vmatpush.msra.mxu0 0.0
    %294 = vmatpush.msra.mxu0 0.0
    %295 = vmatpush.msra.mxu0 0.0
    %296 = vmatpush.msra.mxu0 0.0
    %297 = vmatpush.msra.mxu0 %v120
    %298 = vmatpush.msra.mxu0 %v119
    %299 = vmatpush.msra.mxu0 %v118
    %300 = vmatpush.msra.mxu0 %v117
    %301 = vmatmul.f32.gmra.mxu0 %v283
    %v302 = vpop.f32.mrf.mxu0
    %v303 = vadd.f32 0.0, %v302
    %304 = vdwg.mxu0
    %v305 = vadd.f32 %v282, %v303
    %v306 = vxor.u32 %v305, 2147483648
    %v307 = vmul.f32 %v306, 1.442695
    %v308 = vpow.pop %v307
    %v309 = vadd.f32 %v308, 1.0
    %v310 = vrcp.pop %v309
    %v311 = vmul.f32 %v309, %v310
    %v312 = vsub.f32 1.0, %v311
    %v313 = vmul.f32 %v310, %v312
    %v314 = vadd.f32 %v310, %v313
    %vm315 = vweird.f32 %v309
    %vm316 = vweird.f32 %v310
    %vm317 = vmor %vm315, %vm316
    %v318 = vsel %vm317, %v310, %v314
    %v319 = vand.u32 2147483647, %v309
    %vm320 = vcmp.eq.f32.partialorder %v319, 8.507059e+37
    %v321 = vand.u32 %v309, 2147483648
    %v322 = vor.u32 1.1754944e-38, %v321
    %v323 = vsel %vm320, %v322, %v318
    %v324 = vmul.f32 1.0, %v323
    %v325 = vtanh.pop %v305
    %v326 = vmul.f32 %v324, %v197
    %328 = vrot.lane.b32.xlu0 %v325, 32
    %v329 = vpop.permute.xlu0 %328
    %v331 = vmul.f32 %v324, %v329
    %333 = vrot.lane.b32.xlu0 %v331, 32
    %v334 = vpop.permute.xlu0 %333
    %v336 = vadd.f32 %v326, %v334
    %v337 = vtanh.pop %v336
    %339 = vrot.lane.b32.xlu0 %v337, 32
    %v340 = vpop.permute.xlu0 %339
    %v342 = vmul.f32 %v324, %v340
    %344 = vrot.lane.b32.xlu0 %v342, 64
    %v345 = vpop.permute.xlu0 %344
    %347 = vst.msk [vmem:[#allocation3] sm:$0x3] %vm208, %v345
    %349 = vrot.lane.b32.xlu0 %v280, 96
    %v350 = vpop.permute.xlu0 %349
    %352 = vst.msk [vmem:[#allocation3] sm:$0x3] %vm214, %v350
    %v353 = vld [vmem:[#allocation3] sm:$0x3]
    %v355 = vsel %vm85, %v353, 0
    %357 = vmatpush.msra.mxu0 0.0
    %358 = vmatpush.msra.mxu0 0.0
    %359 = vmatpush.msra.mxu0 0.0
    %360 = vmatpush.msra.mxu0 0.0
    %361 = vmatpush.msra.mxu0 0.0
    %362 = vmatpush.msra.mxu0 0.0
    %363 = vmatpush.msra.mxu0 0.0
    %364 = vmatpush.msra.mxu0 0.0
    %365 = vmatpush.msra.mxu0 %v128
    %366 = vmatpush.msra.mxu0 %v127
    %367 = vmatpush.msra.mxu0 %v126
    %368 = vmatpush.msra.mxu0 %v125
    %369 = vmatpush.msra.mxu0 %v124
    %370 = vmatpush.msra.mxu0 %v123
    %371 = vmatpush.msra.mxu0 %v122
    %372 = vmatpush.msra.mxu0 %v121
    %373 = vmatmul.f32.gmra.mxu0 %v355
    %v374 = vpop.f32.mrf.mxu0
    %v375 = vadd.f32 %v131, %v374
    %376 = vdwg.mxu0
    %v377 = vxor.u32 %v375, 2147483648
    %v378 = vmul.f32 %v377, 1.442695
    %v379 = vpow.pop %v378
    %v380 = vadd.f32 %v379, 1.0
    %v381 = vrcp.pop %v380
    %v382 = vmul.f32 %v380, %v381
    %v383 = vsub.f32 1.0, %v382
    %v384 = vmul.f32 %v381, %v383
    %v385 = vadd.f32 %v381, %v384
    %vm386 = vweird.f32 %v380
    %vm387 = vweird.f32 %v381
    %vm388 = vmor %vm386, %vm387
    %v389 = vsel %vm388, %v381, %v385
    %v390 = vand.u32 2147483647, %v380
    %vm391 = vcmp.eq.f32.partialorder %v390, 8.507059e+37
    %v392 = vand.u32 %v380, 2147483648
    %v393 = vor.u32 1.1754944e-38, %v392
    %v394 = vsel %vm391, %v393, %v389
    %v395 = vmul.f32 1.0, %v394
    %v396 = vtanh.pop %v375
    %v397 = vmul.f32 %v395, %v274
    %399 = vrot.lane.b32.xlu0 %v396, 32
    %v400 = vpop.permute.xlu0 %399
    %v402 = vmul.f32 %v395, %v400
    %404 = vrot.lane.b32.xlu0 %v402, 32
    %v405 = vpop.permute.xlu0 %404
    %v407 = vadd.f32 %v397, %v405
    %v408 = vtanh.pop %v407
    %410 = vrot.lane.b32.xlu0 %v408, 32
    %v411 = vpop.permute.xlu0 %410
    %v413 = vmul.f32 %v395, %v411
    %s414 = scalar_lea.vmem [#allocation2], 4
    %v415 = vld [vmem:[%s414] sm:$0x3]
    %v416 = vsel %vm138, %v345, 0
    %418 = vmatpush.msra.mxu0 0.0
    %419 = vmatpush.msra.mxu0 0.0
    %420 = vmatpush.msra.mxu0 0.0
    %421 = vmatpush.msra.mxu0 0.0
    %422 = vmatpush.msra.mxu0 0.0
    %423 = vmatpush.msra.mxu0 0.0
    %424 = vmatpush.msra.mxu0 0.0
    %425 = vmatpush.msra.mxu0 0.0
    %426 = vmatpush.msra.mxu0 0.0
    %427 = vmatpush.msra.mxu0 0.0
    %428 = vmatpush.msra.mxu0 0.0
    %429 = vmatpush.msra.mxu0 0.0
    %430 = vmatpush.msra.mxu0 %v120
    %431 = vmatpush.msra.mxu0 %v119
    %432 = vmatpush.msra.mxu0 %v118
    %433 = vmatpush.msra.mxu0 %v117
    %434 = vmatmul.f32.gmra.mxu0 %v416
    %v435 = vpop.f32.mrf.mxu0
    %v436 = vadd.f32 0.0, %v435
    %437 = vdwg.mxu0
    %v438 = vadd.f32 %v415, %v436
    %v439 = vxor.u32 %v438, 2147483648
    %v440 = vmul.f32 %v439, 1.442695
    %v441 = vpow.pop %v440
    %v442 = vadd.f32 %v441, 1.0
    %v443 = vrcp.pop %v442
    %v444 = vmul.f32 %v442, %v443
    %v445 = vsub.f32 1.0, %v444
    %v446 = vmul.f32 %v443, %v445
    %v447 = vadd.f32 %v443, %v446
    %vm448 = vweird.f32 %v442
    %vm449 = vweird.f32 %v443
    %vm450 = vmor %vm448, %vm449
    %v451 = vsel %vm450, %v443, %v447
    %v452 = vand.u32 2147483647, %v442
    %vm453 = vcmp.eq.f32.partialorder %v452, 8.507059e+37
    %v454 = vand.u32 %v442, 2147483648
    %v455 = vor.u32 1.1754944e-38, %v454
    %v456 = vsel %vm453, %v455, %v451
    %v457 = vmul.f32 1.0, %v456
    %v458 = vtanh.pop %v438
    %v459 = vmul.f32 %v457, %v336
    %461 = vrot.lane.b32.xlu0 %v458, 32
    %v462 = vpop.permute.xlu0 %461
    %v464 = vmul.f32 %v457, %v462
    %466 = vrot.lane.b32.xlu0 %v464, 32
    %v467 = vpop.permute.xlu0 %466
    %v469 = vadd.f32 %v459, %v467
    %v470 = vtanh.pop %v469
    %472 = vrot.lane.b32.xlu0 %v470, 32
    %v473 = vpop.permute.xlu0 %472
    %v475 = vmul.f32 %v457, %v473
    %477 = vrot.lane.b32.xlu0 %v475, 64
    %v478 = vpop.permute.xlu0 %477
    %480 = vst.msk [vmem:[#allocation3] sm:$0x3] %vm208, %v478
    %482 = vrot.lane.b32.xlu0 %v413, 96
    %v483 = vpop.permute.xlu0 %482
    %485 = vst.msk [vmem:[#allocation3] sm:$0x3] %vm214, %v483
    %v486 = vld [vmem:[#allocation3] sm:$0x3]
    %v488 = vsel %vm85, %v486, 0
    %490 = vmatpush.msra.mxu0 0.0
    %491 = vmatpush.msra.mxu0 0.0
    %492 = vmatpush.msra.mxu0 0.0
    %493 = vmatpush.msra.mxu0 0.0
    %494 = vmatpush.msra.mxu0 0.0
    %495 = vmatpush.msra.mxu0 0.0
    %496 = vmatpush.msra.mxu0 0.0
    %497 = vmatpush.msra.mxu0 0.0
    %498 = vmatpush.msra.mxu0 %v128
    %499 = vmatpush.msra.mxu0 %v127
    %500 = vmatpush.msra.mxu0 %v126
    %501 = vmatpush.msra.mxu0 %v125
    %502 = vmatpush.msra.mxu0 %v124
    %503 = vmatpush.msra.mxu0 %v123
    %504 = vmatpush.msra.mxu0 %v122
    %505 = vmatpush.msra.mxu0 %v121
    %506 = vmatmul.f32.gmra.mxu0 %v488
    %v507 = vpop.f32.mrf.mxu0
    %v508 = vadd.f32 %v131, %v507
    %509 = vdwg.mxu0
    %v510 = vxor.u32 %v508, 2147483648
    %v511 = vmul.f32 %v510, 1.442695
    %v512 = vpow.pop %v511
    %v513 = vadd.f32 %v512, 1.0
    %v514 = vrcp.pop %v513
    %v515 = vmul.f32 %v513, %v514
    %v516 = vsub.f32 1.0, %v515
    %v517 = vmul.f32 %v514, %v516
    %v518 = vadd.f32 %v514, %v517
    %vm519 = vweird.f32 %v513
    %vm520 = vweird.f32 %v514
    %vm521 = vmor %vm519, %vm520
    %v522 = vsel %vm521, %v514, %v518
    %v523 = vand.u32 2147483647, %v513
    %vm524 = vcmp.eq.f32.partialorder %v523, 8.507059e+37
    %v525 = vand.u32 %v513, 2147483648
    %v526 = vor.u32 1.1754944e-38, %v525
    %v527 = vsel %vm524, %v526, %v522
    %v528 = vmul.f32 1.0, %v527
    %v529 = vtanh.pop %v508
    %v530 = vmul.f32 %v528, %v407
    %532 = vrot.lane.b32.xlu0 %v529, 32
    %v533 = vpop.permute.xlu0 %532
    %v535 = vmul.f32 %v528, %v533
    %537 = vrot.lane.b32.xlu0 %v535, 32
    %v538 = vpop.permute.xlu0 %537
    %v540 = vadd.f32 %v530, %v538
    %v541 = vtanh.pop %v540
    %543 = vrot.lane.b32.xlu0 %v541, 32
    %v544 = vpop.permute.xlu0 %543
    %v546 = vmul.f32 %v528, %v544
    %s547 = scalar_lea.vmem [#allocation2], 6
    %v548 = vld [vmem:[%s547] sm:$0x3]
    %v549 = vsel %vm138, %v478, 0
    %551 = vmatpush.msra.mxu0 0.0
    %552 = vmatpush.msra.mxu0 0.0
    %553 = vmatpush.msra.mxu0 0.0
    %554 = vmatpush.msra.mxu0 0.0
    %555 = vmatpush.msra.mxu0 0.0
    %556 = vmatpush.msra.mxu0 0.0
    %557 = vmatpush.msra.mxu0 0.0
    %558 = vmatpush.msra.mxu0 0.0
    %559 = vmatpush.msra.mxu0 0.0
    %560 = vmatpush.msra.mxu0 0.0
    %561 = vmatpush.msra.mxu0 0.0
    %562 = vmatpush.msra.mxu0 0.0
    %563 = vmatpush.msra.mxu0 %v120
    %564 = vmatpush.msra.mxu0 %v119
    %565 = vmatpush.msra.mxu0 %v118
    %566 = vmatpush.msra.mxu0 %v117
    %567 = vmatmul.f32.gmra.mxu0 %v549
    %v568 = vpop.f32.mrf.mxu0
    %v569 = vadd.f32 0.0, %v568
    %570 = vdwg.mxu0
    %v571 = vadd.f32 %v548, %v569
    %v572 = vxor.u32 %v571, 2147483648
    %v573 = vmul.f32 %v572, 1.442695
    %v574 = vpow.pop %v573
    %v575 = vadd.f32 %v574, 1.0
    %v576 = vrcp.pop %v575
    %v577 = vmul.f32 %v575, %v576
    %v578 = vsub.f32 1.0, %v577
    %v579 = vmul.f32 %v576, %v578
    %v580 = vadd.f32 %v576, %v579
    %vm581 = vweird.f32 %v575
    %vm582 = vweird.f32 %v576
    %vm583 = vmor %vm581, %vm582
    %v584 = vsel %vm583, %v576, %v580
    %v585 = vand.u32 2147483647, %v575
    %vm586 = vcmp.eq.f32.partialorder %v585, 8.507059e+37
    %v587 = vand.u32 %v575, 2147483648
    %v588 = vor.u32 1.1754944e-38, %v587
    %v589 = vsel %vm586, %v588, %v584
    %v590 = vmul.f32 1.0, %v589
    %v591 = vtanh.pop %v571
    %v592 = vmul.f32 %v590, %v469
    %594 = vrot.lane.b32.xlu0 %v591, 32
    %v595 = vpop.permute.xlu0 %594
    %v597 = vmul.f32 %v590, %v595
    %599 = vrot.lane.b32.xlu0 %v597, 32
    %v600 = vpop.permute.xlu0 %599
    %v602 = vadd.f32 %v592, %v600
    %v603 = vtanh.pop %v602
    %605 = vrot.lane.b32.xlu0 %v603, 32
    %v606 = vpop.permute.xlu0 %605
    %v608 = vmul.f32 %v590, %v606
    %610 = vrot.lane.b32.xlu0 %v608, 64
    %v611 = vpop.permute.xlu0 %610
    %613 = vst.msk [vmem:[#allocation3] sm:$0x3] %vm208, %v611
    %615 = vrot.lane.b32.xlu0 %v546, 96
    %v616 = vpop.permute.xlu0 %615
    %618 = vst.msk [vmem:[#allocation3] sm:$0x3] %vm214, %v616
    %v619 = vld [vmem:[#allocation3] sm:$0x3]
    %v621 = vsel %vm85, %v619, 0
    %623 = vmatpush.msra.mxu0 0.0
    %624 = vmatpush.msra.mxu0 0.0
    %625 = vmatpush.msra.mxu0 0.0
    %626 = vmatpush.msra.mxu0 0.0
    %627 = vmatpush.msra.mxu0 0.0
    %628 = vmatpush.msra.mxu0 0.0
    %629 = vmatpush.msra.mxu0 0.0
    %630 = vmatpush.msra.mxu0 0.0
    %631 = vmatpush.msra.mxu0 %v128
    %632 = vmatpush.msra.mxu0 %v127
    %633 = vmatpush.msra.mxu0 %v126
    %634 = vmatpush.msra.mxu0 %v125
    %635 = vmatpush.msra.mxu0 %v124
    %636 = vmatpush.msra.mxu0 %v123
    %637 = vmatpush.msra.mxu0 %v122
    %638 = vmatpush.msra.mxu0 %v121
    %639 = vmatmul.f32.gmra.mxu0 %v621
    %v640 = vpop.f32.mrf.mxu0
    %v641 = vadd.f32 %v131, %v640
    %642 = vdwg.mxu0
    %v643 = vxor.u32 %v641, 2147483648
    %v644 = vmul.f32 %v643, 1.442695
    %v645 = vpow.pop %v644
    %v646 = vadd.f32 %v645, 1.0
    %v647 = vrcp.pop %v646
    %v648 = vmul.f32 %v646, %v647
    %v649 = vsub.f32 1.0, %v648
    %v650 = vmul.f32 %v647, %v649
    %v651 = vadd.f32 %v647, %v650
    %vm652 = vweird.f32 %v646
    %vm653 = vweird.f32 %v647
    %vm654 = vmor %vm652, %vm653
    %v655 = vsel %vm654, %v647, %v651
    %v656 = vand.u32 2147483647, %v646
    %vm657 = vcmp.eq.f32.partialorder %v656, 8.507059e+37
    %v658 = vand.u32 %v646, 2147483648
    %v659 = vor.u32 1.1754944e-38, %v658
    %v660 = vsel %vm657, %v659, %v655
    %v661 = vmul.f32 1.0, %v660
    %v662 = vtanh.pop %v641
    %v663 = vmul.f32 %v661, %v540
    %665 = vrot.lane.b32.xlu0 %v662, 32
    %v666 = vpop.permute.xlu0 %665
    %v668 = vmul.f32 %v661, %v666
    %670 = vrot.lane.b32.xlu0 %v668, 32
    %v671 = vpop.permute.xlu0 %670
    %v673 = vadd.f32 %v663, %v671
    %v674 = vtanh.pop %v673
    %676 = vrot.lane.b32.xlu0 %v674, 32
    %v677 = vpop.permute.xlu0 %676
    %v679 = vmul.f32 %v661, %v677
    %s680 = scalar_lea.vmem [#allocation2], 8
    %v681 = vld [vmem:[%s680] sm:$0x3]
    %v682 = vsel %vm138, %v611, 0
    %684 = vmatpush.msra.mxu0 0.0
    %685 = vmatpush.msra.mxu0 0.0
    %686 = vmatpush.msra.mxu0 0.0
    %687 = vmatpush.msra.mxu0 0.0
    %688 = vmatpush.msra.mxu0 0.0
    %689 = vmatpush.msra.mxu0 0.0
    %690 = vmatpush.msra.mxu0 0.0
    %691 = vmatpush.msra.mxu0 0.0
    %692 = vmatpush.msra.mxu0 0.0
    %693 = vmatpush.msra.mxu0 0.0
    %694 = vmatpush.msra.mxu0 0.0
    %695 = vmatpush.msra.mxu0 0.0
    %696 = vmatpush.msra.mxu0 %v120
    %697 = vmatpush.msra.mxu0 %v119
    %698 = vmatpush.msra.mxu0 %v118
    %699 = vmatpush.msra.mxu0 %v117
    %700 = vmatmul.f32.gmra.mxu0 %v682
    %v701 = vpop.f32.mrf.mxu0
    %v702 = vadd.f32 0.0, %v701
    %703 = vdwg.mxu0
    %v704 = vadd.f32 %v681, %v702
    %v705 = vxor.u32 %v704, 2147483648
    %v706 = vmul.f32 %v705, 1.442695
    %v707 = vpow.pop %v706
    %v708 = vadd.f32 %v707, 1.0
    %v709 = vrcp.pop %v708
    %v710 = vmul.f32 %v708, %v709
    %v711 = vsub.f32 1.0, %v710
    %v712 = vmul.f32 %v709, %v711
    %v713 = vadd.f32 %v709, %v712
    %vm714 = vweird.f32 %v708
    %vm715 = vweird.f32 %v709
    %vm716 = vmor %vm714, %vm715
    %v717 = vsel %vm716, %v709, %v713
    %v718 = vand.u32 2147483647, %v708
    %vm719 = vcmp.eq.f32.partialorder %v718, 8.507059e+37
    %v720 = vand.u32 %v708, 2147483648
    %v721 = vor.u32 1.1754944e-38, %v720
    %v722 = vsel %vm719, %v721, %v717
    %v723 = vmul.f32 1.0, %v722
    %v724 = vtanh.pop %v704
    %v725 = vmul.f32 %v723, %v602
    %727 = vrot.lane.b32.xlu0 %v724, 32
    %v728 = vpop.permute.xlu0 %727
    %v730 = vmul.f32 %v723, %v728
    %732 = vrot.lane.b32.xlu0 %v730, 32
    %v733 = vpop.permute.xlu0 %732
    %v735 = vadd.f32 %v725, %v733
    %v736 = vtanh.pop %v735
    %738 = vrot.lane.b32.xlu0 %v736, 32
    %v739 = vpop.permute.xlu0 %738
    %v741 = vmul.f32 %v723, %v739
    %743 = vrot.lane.b32.xlu0 %v741, 64
    %v744 = vpop.permute.xlu0 %743
    %746 = vst.msk [vmem:[#allocation3] sm:$0x3] %vm208, %v744
    %748 = vrot.lane.b32.xlu0 %v679, 96
    %v749 = vpop.permute.xlu0 %748
    %751 = vst.msk [vmem:[#allocation3] sm:$0x3] %vm214, %v749
    %v752 = vld [vmem:[#allocation3] sm:$0x3]
    %v754 = vsel %vm85, %v752, 0
    %756 = vmatpush.msra.mxu0 0.0
    %757 = vmatpush.msra.mxu0 0.0
    %758 = vmatpush.msra.mxu0 0.0
    %759 = vmatpush.msra.mxu0 0.0
    %760 = vmatpush.msra.mxu0 0.0
    %761 = vmatpush.msra.mxu0 0.0
    %762 = vmatpush.msra.mxu0 0.0
    %763 = vmatpush.msra.mxu0 0.0
    %764 = vmatpush.msra.mxu0 %v128
    %765 = vmatpush.msra.mxu0 %v127
    %766 = vmatpush.msra.mxu0 %v126
    %767 = vmatpush.msra.mxu0 %v125
    %768 = vmatpush.msra.mxu0 %v124
    %769 = vmatpush.msra.mxu0 %v123
    %770 = vmatpush.msra.mxu0 %v122
    %771 = vmatpush.msra.mxu0 %v121
    %772 = vmatmul.f32.gmra.mxu0 %v754
    %v773 = vpop.f32.mrf.mxu0
    %v774 = vadd.f32 %v131, %v773
    %775 = vdwg.mxu0
    %v776 = vxor.u32 %v774, 2147483648
    %v777 = vmul.f32 %v776, 1.442695
    %v778 = vpow.pop %v777
    %v779 = vadd.f32 %v778, 1.0
    %v780 = vrcp.pop %v779
    %v781 = vmul.f32 %v779, %v780
    %v782 = vsub.f32 1.0, %v781
    %v783 = vmul.f32 %v780, %v782
    %v784 = vadd.f32 %v780, %v783
    %vm785 = vweird.f32 %v779
    %vm786 = vweird.f32 %v780
    %vm787 = vmor %vm785, %vm786
    %v788 = vsel %vm787, %v780, %v784
    %v789 = vand.u32 2147483647, %v779
    %vm790 = vcmp.eq.f32.partialorder %v789, 8.507059e+37
    %v791 = vand.u32 %v779, 2147483648
    %v792 = vor.u32 1.1754944e-38, %v791
    %v793 = vsel %vm790, %v792, %v788
    %v794 = vmul.f32 1.0, %v793
    %v795 = vtanh.pop %v774
    %v796 = vmul.f32 %v794, %v673
    %798 = vrot.lane.b32.xlu0 %v795, 32
    %v799 = vpop.permute.xlu0 %798
    %v801 = vmul.f32 %v794, %v799
    %803 = vrot.lane.b32.xlu0 %v801, 32
    %v804 = vpop.permute.xlu0 %803
    %v806 = vadd.f32 %v796, %v804
    %v807 = vtanh.pop %v806
    %809 = vrot.lane.b32.xlu0 %v807, 32
    %v810 = vpop.permute.xlu0 %809
    %v812 = vmul.f32 %v794, %v810
    %s813 = scalar_lea.vmem [#allocation2], 10
    %v814 = vld [vmem:[%s813] sm:$0x3]
    %v815 = vsel %vm138, %v744, 0
    %817 = vmatpush.msra.mxu0 0.0
    %818 = vmatpush.msra.mxu0 0.0
    %819 = vmatpush.msra.mxu0 0.0
    %820 = vmatpush.msra.mxu0 0.0
    %821 = vmatpush.msra.mxu0 0.0
    %822 = vmatpush.msra.mxu0 0.0
    %823 = vmatpush.msra.mxu0 0.0
    %824 = vmatpush.msra.mxu0 0.0
    %825 = vmatpush.msra.mxu0 0.0
    %826 = vmatpush.msra.mxu0 0.0
    %827 = vmatpush.msra.mxu0 0.0
    %828 = vmatpush.msra.mxu0 0.0
    %829 = vmatpush.msra.mxu0 %v120
    %830 = vmatpush.msra.mxu0 %v119
    %831 = vmatpush.msra.mxu0 %v118
    %832 = vmatpush.msra.mxu0 %v117
    %833 = vmatmul.f32.gmra.mxu0 %v815
    %v834 = vpop.f32.mrf.mxu0
    %v835 = vadd.f32 0.0, %v834
    %836 = vdwg.mxu0
    %v837 = vadd.f32 %v814, %v835
    %v838 = vxor.u32 %v837, 2147483648
    %v839 = vmul.f32 %v838, 1.442695
    %v840 = vpow.pop %v839
    %v841 = vadd.f32 %v840, 1.0
    %v842 = vrcp.pop %v841
    %v843 = vmul.f32 %v841, %v842
    %v844 = vsub.f32 1.0, %v843
    %v845 = vmul.f32 %v842, %v844
    %v846 = vadd.f32 %v842, %v845
    %vm847 = vweird.f32 %v841
    %vm848 = vweird.f32 %v842
    %vm849 = vmor %vm847, %vm848
    %v850 = vsel %vm849, %v842, %v846
    %v851 = vand.u32 2147483647, %v841
    %vm852 = vcmp.eq.f32.partialorder %v851, 8.507059e+37
    %v853 = vand.u32 %v841, 2147483648
    %v854 = vor.u32 1.1754944e-38, %v853
    %v855 = vsel %vm852, %v854, %v850
    %v856 = vmul.f32 1.0, %v855
    %v857 = vtanh.pop %v837
    %v858 = vmul.f32 %v856, %v735
    %860 = vrot.lane.b32.xlu0 %v857, 32
    %v861 = vpop.permute.xlu0 %860
    %v863 = vmul.f32 %v856, %v861
    %865 = vrot.lane.b32.xlu0 %v863, 32
    %v866 = vpop.permute.xlu0 %865
    %v868 = vadd.f32 %v858, %v866
    %v869 = vtanh.pop %v868
    %871 = vrot.lane.b32.xlu0 %v869, 32
    %v872 = vpop.permute.xlu0 %871
    %v874 = vmul.f32 %v856, %v872
    %876 = vrot.lane.b32.xlu0 %v874, 64
    %v877 = vpop.permute.xlu0 %876
    %879 = vst.msk [vmem:[#allocation3] sm:$0x3] %vm208, %v877
    %881 = vrot.lane.b32.xlu0 %v812, 96
    %v882 = vpop.permute.xlu0 %881
    %884 = vst.msk [vmem:[#allocation3] sm:$0x3] %vm214, %v882
    %v885 = vld [vmem:[#allocation3] sm:$0x3]
    %v887 = vsel %vm85, %v885, 0
    %889 = vmatpush.msra.mxu0 0.0
    %890 = vmatpush.msra.mxu0 0.0
    %891 = vmatpush.msra.mxu0 0.0
    %892 = vmatpush.msra.mxu0 0.0
    %893 = vmatpush.msra.mxu0 0.0
    %894 = vmatpush.msra.mxu0 0.0
    %895 = vmatpush.msra.mxu0 0.0
    %896 = vmatpush.msra.mxu0 0.0
    %897 = vmatpush.msra.mxu0 %v128
    %898 = vmatpush.msra.mxu0 %v127
    %899 = vmatpush.msra.mxu0 %v126
    %900 = vmatpush.msra.mxu0 %v125
    %901 = vmatpush.msra.mxu0 %v124
    %902 = vmatpush.msra.mxu0 %v123
    %903 = vmatpush.msra.mxu0 %v122
    %904 = vmatpush.msra.mxu0 %v121
    %905 = vmatmul.f32.gmra.mxu0 %v887
    %v906 = vpop.f32.mrf.mxu0
    %v907 = vadd.f32 %v131, %v906
    %908 = vdwg.mxu0
    %v909 = vxor.u32 %v907, 2147483648
    %v910 = vmul.f32 %v909, 1.442695
    %v911 = vpow.pop %v910
    %v912 = vadd.f32 %v911, 1.0
    %v913 = vrcp.pop %v912
    %v914 = vmul.f32 %v912, %v913
    %v915 = vsub.f32 1.0, %v914
    %v916 = vmul.f32 %v913, %v915
    %v917 = vadd.f32 %v913, %v916
    %vm918 = vweird.f32 %v912
    %vm919 = vweird.f32 %v913
    %vm920 = vmor %vm918, %vm919
    %v921 = vsel %vm920, %v913, %v917
    %v922 = vand.u32 2147483647, %v912
    %vm923 = vcmp.eq.f32.partialorder %v922, 8.507059e+37
    %v924 = vand.u32 %v912, 2147483648
    %v925 = vor.u32 1.1754944e-38, %v924
    %v926 = vsel %vm923, %v925, %v921
    %v927 = vmul.f32 1.0, %v926
    %v928 = vtanh.pop %v907
    %v929 = vmul.f32 %v927, %v806
    %931 = vrot.lane.b32.xlu0 %v928, 32
    %v932 = vpop.permute.xlu0 %931
    %v934 = vmul.f32 %v927, %v932
    %936 = vrot.lane.b32.xlu0 %v934, 32
    %v937 = vpop.permute.xlu0 %936
    %v939 = vadd.f32 %v929, %v937
    %v940 = vtanh.pop %v939
    %942 = vrot.lane.b32.xlu0 %v940, 32
    %v943 = vpop.permute.xlu0 %942
    %v945 = vmul.f32 %v927, %v943
    %s946 = scalar_lea.vmem [#allocation2], 12
    %v947 = vld [vmem:[%s946] sm:$0x3]
    %v948 = vsel %vm138, %v877, 0
    %950 = vmatpush.msra.mxu0 0.0
    %951 = vmatpush.msra.mxu0 0.0
    %952 = vmatpush.msra.mxu0 0.0
    %953 = vmatpush.msra.mxu0 0.0
    %954 = vmatpush.msra.mxu0 0.0
    %955 = vmatpush.msra.mxu0 0.0
    %956 = vmatpush.msra.mxu0 0.0
    %957 = vmatpush.msra.mxu0 0.0
    %958 = vmatpush.msra.mxu0 0.0
    %959 = vmatpush.msra.mxu0 0.0
    %960 = vmatpush.msra.mxu0 0.0
    %961 = vmatpush.msra.mxu0 0.0
    %962 = vmatpush.msra.mxu0 %v120
    %963 = vmatpush.msra.mxu0 %v119
    %964 = vmatpush.msra.mxu0 %v118
    %965 = vmatpush.msra.mxu0 %v117
    %966 = vmatmul.f32.gmra.mxu0 %v948
    %v967 = vpop.f32.mrf.mxu0
    %v968 = vadd.f32 0.0, %v967
    %969 = vdwg.mxu0
    %v970 = vadd.f32 %v947, %v968
    %v971 = vxor.u32 %v970, 2147483648
    %v972 = vmul.f32 %v971, 1.442695
    %v973 = vpow.pop %v972
    %v974 = vadd.f32 %v973, 1.0
    %v975 = vrcp.pop %v974
    %v976 = vmul.f32 %v974, %v975
    %v977 = vsub.f32 1.0, %v976
    %v978 = vmul.f32 %v975, %v977
    %v979 = vadd.f32 %v975, %v978
    %vm980 = vweird.f32 %v974
    %vm981 = vweird.f32 %v975
    %vm982 = vmor %vm980, %vm981
    %v983 = vsel %vm982, %v975, %v979
    %v984 = vand.u32 2147483647, %v974
    %vm985 = vcmp.eq.f32.partialorder %v984, 8.507059e+37
    %v986 = vand.u32 %v974, 2147483648
    %v987 = vor.u32 1.1754944e-38, %v986
    %v988 = vsel %vm985, %v987, %v983
    %v989 = vmul.f32 1.0, %v988
    %v990 = vtanh.pop %v970
    %v991 = vmul.f32 %v989, %v868
    %993 = vrot.lane.b32.xlu0 %v990, 32
    %v994 = vpop.permute.xlu0 %993
    %v996 = vmul.f32 %v989, %v994
    %998 = vrot.lane.b32.xlu0 %v996, 32
    %v999 = vpop.permute.xlu0 %998
    %v1001 = vadd.f32 %v991, %v999
    %v1002 = vtanh.pop %v1001
    %1004 = vrot.lane.b32.xlu0 %v1002, 32
    %v1005 = vpop.permute.xlu0 %1004
    %v1007 = vmul.f32 %v989, %v1005
    %1009 = vrot.lane.b32.xlu0 %v1007, 64
    %v1010 = vpop.permute.xlu0 %1009
    %1012 = vst.msk [vmem:[#allocation3] sm:$0x3] %vm208, %v1010
    %1014 = vrot.lane.b32.xlu0 %v945, 96
    %v1015 = vpop.permute.xlu0 %1014
    %1017 = vst.msk [vmem:[#allocation3] sm:$0x3] %vm214, %v1015
    %v1018 = vld [vmem:[#allocation3] sm:$0x3]
    %v1020 = vsel %vm85, %v1018, 0
    %1022 = vmatpush.msra.mxu0 0.0
    %1023 = vmatpush.msra.mxu0 0.0
    %1024 = vmatpush.msra.mxu0 0.0
    %1025 = vmatpush.msra.mxu0 0.0
    %1026 = vmatpush.msra.mxu0 0.0
    %1027 = vmatpush.msra.mxu0 0.0
    %1028 = vmatpush.msra.mxu0 0.0
    %1029 = vmatpush.msra.mxu0 0.0
    %1030 = vmatpush.msra.mxu0 %v128
    %1031 = vmatpush.msra.mxu0 %v127
    %1032 = vmatpush.msra.mxu0 %v126
    %1033 = vmatpush.msra.mxu0 %v125
    %1034 = vmatpush.msra.mxu0 %v124
    %1035 = vmatpush.msra.mxu0 %v123
    %1036 = vmatpush.msra.mxu0 %v122
    %1037 = vmatpush.msra.mxu0 %v121
    %1038 = vmatmul.f32.gmra.mxu0 %v1020
    %v1039 = vpop.f32.mrf.mxu0
    %v1040 = vadd.f32 %v131, %v1039
    %1041 = vdwg.mxu0
    %v1042 = vxor.u32 %v1040, 2147483648
    %v1043 = vmul.f32 %v1042, 1.442695
    %v1044 = vpow.pop %v1043
    %v1045 = vadd.f32 %v1044, 1.0
    %v1046 = vrcp.pop %v1045
    %v1047 = vmul.f32 %v1045, %v1046
    %v1048 = vsub.f32 1.0, %v1047
    %v1049 = vmul.f32 %v1046, %v1048
    %v1050 = vadd.f32 %v1046, %v1049
    %vm1051 = vweird.f32 %v1045
    %vm1052 = vweird.f32 %v1046
    %vm1053 = vmor %vm1051, %vm1052
    %v1054 = vsel %vm1053, %v1046, %v1050
    %v1055 = vand.u32 2147483647, %v1045
    %vm1056 = vcmp.eq.f32.partialorder %v1055, 8.507059e+37
    %v1057 = vand.u32 %v1045, 2147483648
    %v1058 = vor.u32 1.1754944e-38, %v1057
    %v1059 = vsel %vm1056, %v1058, %v1054
    %v1060 = vmul.f32 1.0, %v1059
    %v1061 = vtanh.pop %v1040
    %v1062 = vmul.f32 %v1060, %v939
    %1064 = vrot.lane.b32.xlu0 %v1061, 32
    %v1065 = vpop.permute.xlu0 %1064
    %v1067 = vmul.f32 %v1060, %v1065
    %1069 = vrot.lane.b32.xlu0 %v1067, 32
    %v1070 = vpop.permute.xlu0 %1069
    %v1072 = vadd.f32 %v1062, %v1070
    %v1073 = vtanh.pop %v1072
    %1075 = vrot.lane.b32.xlu0 %v1073, 32
    %v1076 = vpop.permute.xlu0 %1075
    %v1078 = vmul.f32 %v1060, %v1076
    %s1079 = scalar_lea.vmem [#allocation2], 14
    %v1080 = vld [vmem:[%s1079] sm:$0x3]
    %v1081 = vsel %vm138, %v1010, 0
    %1083 = vmatpush.msra.mxu0 0.0
    %1084 = vmatpush.msra.mxu0 0.0
    %1085 = vmatpush.msra.mxu0 0.0
    %1086 = vmatpush.msra.mxu0 0.0
    %1087 = vmatpush.msra.mxu0 0.0
    %1088 = vmatpush.msra.mxu0 0.0
    %1089 = vmatpush.msra.mxu0 0.0
    %1090 = vmatpush.msra.mxu0 0.0
    %1091 = vmatpush.msra.mxu0 0.0
    %1092 = vmatpush.msra.mxu0 0.0
    %1093 = vmatpush.msra.mxu0 0.0
    %1094 = vmatpush.msra.mxu0 0.0
    %1095 = vmatpush.msra.mxu0 %v120
    %1096 = vmatpush.msra.mxu0 %v119
    %1097 = vmatpush.msra.mxu0 %v118
    %1098 = vmatpush.msra.mxu0 %v117
    %1099 = vmatmul.f32.gmra.mxu0 %v1081
    %v1100 = vpop.f32.mrf.mxu0
    %v1101 = vadd.f32 0.0, %v1100
    %1102 = vdwg.mxu0
    %v1103 = vadd.f32 %v1080, %v1101
    %v1104 = vxor.u32 %v1103, 2147483648
    %v1105 = vmul.f32 %v1104, 1.442695
    %v1106 = vpow.pop %v1105
    %v1107 = vadd.f32 %v1106, 1.0
    %v1108 = vrcp.pop %v1107
    %v1109 = vmul.f32 %v1107, %v1108
    %v1110 = vsub.f32 1.0, %v1109
    %v1111 = vmul.f32 %v1108, %v1110
    %v1112 = vadd.f32 %v1108, %v1111
    %vm1113 = vweird.f32 %v1107
    %vm1114 = vweird.f32 %v1108
    %vm1115 = vmor %vm1113, %vm1114
    %v1116 = vsel %vm1115, %v1108, %v1112
    %v1117 = vand.u32 2147483647, %v1107
    %vm1118 = vcmp.eq.f32.partialorder %v1117, 8.507059e+37
    %v1119 = vand.u32 %v1107, 2147483648
    %v1120 = vor.u32 1.1754944e-38, %v1119
    %v1121 = vsel %vm1118, %v1120, %v1116
    %v1122 = vmul.f32 1.0, %v1121
    %v1123 = vtanh.pop %v1103
    %v1124 = vmul.f32 %v1122, %v1001
    %1126 = vrot.lane.b32.xlu0 %v1123, 32
    %v1127 = vpop.permute.xlu0 %1126
    %v1129 = vmul.f32 %v1122, %v1127
    %1131 = vrot.lane.b32.xlu0 %v1129, 32
    %v1132 = vpop.permute.xlu0 %1131
    %v1134 = vadd.f32 %v1124, %v1132
    %v1135 = vtanh.pop %v1134
    %1137 = vrot.lane.b32.xlu0 %v1135, 32
    %v1138 = vpop.permute.xlu0 %1137
    %v1140 = vmul.f32 %v1122, %v1138
    %1142 = vrot.lane.b32.xlu0 %v1140, 64
    %v1143 = vpop.permute.xlu0 %1142
    %1145 = vst.msk [vmem:[#allocation3] sm:$0x3] %vm208, %v1143
    %1147 = vrot.lane.b32.xlu0 %v1078, 96
    %v1148 = vpop.permute.xlu0 %1147
    %1150 = vst.msk [vmem:[#allocation3] sm:$0x3] %vm214, %v1148
    %v1151 = vld [vmem:[#allocation3] sm:$0x3]
    %v1153 = vsel %vm85, %v1151, 0
    %1155 = vmatpush.msra.mxu0 0.0
    %1156 = vmatpush.msra.mxu0 0.0
    %1157 = vmatpush.msra.mxu0 0.0
    %1158 = vmatpush.msra.mxu0 0.0
    %1159 = vmatpush.msra.mxu0 0.0
    %1160 = vmatpush.msra.mxu0 0.0
    %1161 = vmatpush.msra.mxu0 0.0
    %1162 = vmatpush.msra.mxu0 0.0
    %1163 = vmatpush.msra.mxu0 %v128
    %1164 = vmatpush.msra.mxu0 %v127
    %1165 = vmatpush.msra.mxu0 %v126
    %1166 = vmatpush.msra.mxu0 %v125
    %1167 = vmatpush.msra.mxu0 %v124
    %1168 = vmatpush.msra.mxu0 %v123
    %1169 = vmatpush.msra.mxu0 %v122
    %1170 = vmatpush.msra.mxu0 %v121
    %1171 = vmatmul.f32.gmra.mxu0 %v1153
    %v1172 = vpop.f32.mrf.mxu0
    %v1173 = vadd.f32 %v131, %v1172
    %1174 = vdwg.mxu0
    %v1175 = vxor.u32 %v1173, 2147483648
    %v1176 = vmul.f32 %v1175, 1.442695
    %v1177 = vpow.pop %v1176
    %v1178 = vadd.f32 %v1177, 1.0
    %v1179 = vrcp.pop %v1178
    %v1180 = vmul.f32 %v1178, %v1179
    %v1181 = vsub.f32 1.0, %v1180
    %v1182 = vmul.f32 %v1179, %v1181
    %v1183 = vadd.f32 %v1179, %v1182
    %vm1184 = vweird.f32 %v1178
    %vm1185 = vweird.f32 %v1179
    %vm1186 = vmor %vm1184, %vm1185
    %v1187 = vsel %vm1186, %v1179, %v1183
    %v1188 = vand.u32 2147483647, %v1178
    %vm1189 = vcmp.eq.f32.partialorder %v1188, 8.507059e+37
    %v1190 = vand.u32 %v1178, 2147483648
    %v1191 = vor.u32 1.1754944e-38, %v1190
    %v1192 = vsel %vm1189, %v1191, %v1187
    %v1193 = vmul.f32 1.0, %v1192
    %v1194 = vtanh.pop %v1173
    %v1195 = vmul.f32 %v1193, %v1072
    %1197 = vrot.lane.b32.xlu0 %v1194, 32
    %v1198 = vpop.permute.xlu0 %1197
    %v1200 = vmul.f32 %v1193, %v1198
    %1202 = vrot.lane.b32.xlu0 %v1200, 32
    %v1203 = vpop.permute.xlu0 %1202
    %v1205 = vadd.f32 %v1195, %v1203
    %v1206 = vtanh.pop %v1205
    %1208 = vrot.lane.b32.xlu0 %v1206, 32
    %v1209 = vpop.permute.xlu0 %1208
    %v1211 = vmul.f32 %v1193, %v1209
    %1212 = vst.msk [vmem:[#allocation4] sm:$0x3] %vm208, %v1143
    %1214 = vrot.lane.b32.xlu0 %v1134, 96
    %v1215 = vpop.permute.xlu0 %1214
    %1217 = vst.msk [vmem:[#allocation5] sm:$0x3] %vm208, %v1215
    %1219 = vrot.lane.b32.xlu0 %v1211, 64
    %v1220 = vpop.permute.xlu0 %1219
    %1222 = vst.msk [vmem:[#allocation6] sm:$0x3] %vm208, %v1220
    %1224 = vrot.lane.b32.xlu0 %v1205, 96
    %v1225 = vpop.permute.xlu0 %1224
    %1227 = vst.msk [vmem:[#allocation7] sm:$0x3] %vm208, %v1225
    // Predicated region
    $region46: #{tpu_custom_call.1} parent=1 // pred_check
      %p1228 = pneg %p62
    $region47: #{tpu_custom_call.1} parent=1 // pred_check_branch
      %1230 = sbr.rel (%p1228) target = $region49
    $region48: #{tpu_custom_call.1} parent=1 // pred_region
      %v1231 = vld [vmem:[%s6] sm:$0xff]
      %v1232 = vld [vmem:[%s6 + $0x8] sm:$0xff]
      %v1233 = vld [vmem:[%s6 + $0x10] sm:$0xff]
      %v1234 = vld [vmem:[%s6 + $0x18] sm:$0xff]
      %v1235 = vld [vmem:[%s7] sm:$0x1]
      %v1237 = vperm.slane %v1235, 0
      %v1239 = vsel %vm138, %v1220, 0
      %1241 = vmatpush.msra.mxu0 0.0
      %1242 = vmatpush.msra.mxu0 0.0
      %1243 = vmatpush.msra.mxu0 0.0
      %1244 = vmatpush.msra.mxu0 0.0
      %1245 = vmatpush.msra.mxu0 0.0
      %1246 = vmatpush.msra.mxu0 0.0
      %1247 = vmatpush.msra.mxu0 0.0
      %1248 = vmatpush.msra.mxu0 0.0
      %1249 = vmatpush.msra.mxu0 0.0
      %1250 = vmatpush.msra.mxu0 0.0
      %1251 = vmatpush.msra.mxu0 0.0
      %1252 = vmatpush.msra.mxu0 0.0
      %1253 = vmatpush.msra.mxu0 %v1234
      %1254 = vmatpush.msra.mxu0 %v1233
      %1255 = vmatpush.msra.mxu0 %v1232
      %1256 = vmatpush.msra.mxu0 %v1231
      %1257 = vmatmul.f32.gmra.mxu0 %v1239
      %v1258 = vpop.f32.mrf.mxu0
      %v1259 = vadd.f32 %v1237, %v1258
      %1260 = vdwg.mxu0
      %vm1261 = vcmask 156672
      %1262 = vst.msk [vmem:[#allocation13] sm:$0x3] %vm1261, %v1259
    $region49: #{tpu_custom_call.1} parent=1 // pred_fallthru
      _
    // Predicated region
    $region50: #{tpu_custom_call.1} parent=1 // pred_check
      _
    $region51: #{tpu_custom_call.1} parent=1 // pred_check_branch
      %1264 = sbr.rel (0) target = $region53
    $region52: #{tpu_custom_call.1} parent=1 // pred_region
      %1266 = vsyncadd [#allocation10], 0
      %s1268 = sshll.u32 [#allocation13], 4
      %s1269 = int_to_ptr.vmem [resolvable:$true] %s1268
      %s1270 = sshll.u32 %s8, 4
      %s1271 = int_to_ptr.hbm [resolvable:$true] %s1270
      %1273 = dma.vmem_to_hbm [thread:$0]  %s1269, 32, %s1271, [#allocation10]
    $region53: #{tpu_custom_call.1} parent=1 // pred_fallthru
      _
    // Predicated region
    $region54: #{tpu_custom_call.1} parent=1 // pred_check
      _
    $region55: #{tpu_custom_call.1} parent=1 // pred_check_branch
      %1275 = sbr.rel (0) target = $region57
    $region56: #{tpu_custom_call.1} parent=1 // pred_region
      %1277 = dma.done [#allocation10], 32
    $region57: #{tpu_custom_call.1} parent=1 // pred_fallthru
      _
    %1278 = vsyncpa [#allocation9], 1
    %1279 = vsyncpa [#allocation12], 1
    %1280 = vsyncpa [#allocation10], 1

</llo_original>
